<compile_context>
chip_gen: v7x
topology: tpu7x:2x2x1
jax: 0.10.0
libtpu: 0.0.40
codegen_flags: <defaults>
</compile_context>

<pallas_src>
import math

import jax
import jax.numpy as jnp
from jax.experimental import pallas as pl
from jax.experimental.pallas import tpu as pltpu


def _round_up(x, m):
    return ((x + m - 1) // m) * m


def rotate_kernel(head_ref, rel_ref, tail_ref, ent_ref, rel_emb_ref, cs_ref,
                  o_ref):
    """One batch tile: gather rows from VMEM-resident tables, score them."""
    ent = ent_ref[...].astype(jnp.float32)          # (E, D) entity table
    rel_tab = rel_emb_ref[...].astype(jnp.float32)  # (R, D) relation table
    cs_tab = cs_ref[...].astype(jnp.float32)        # (R, D) cos(r)+sin(r) table

    tb = head_ref.shape[0]

    def one_hot(idx_col, n):
        # idx_col: (tb, 1) int32 -> exact 0/1 one-hot (tb, n) f32.
        cols = jax.lax.broadcasted_iota(jnp.int32, (tb, n), 1)
        return (idx_col == cols).astype(jnp.float32)

    def gather(onehot, table):
        # Row select on the MXU; HIGHEST precision keeps the f32 rows exact.
        return jnp.dot(onehot, table,
                       preferred_element_type=jnp.float32,
                       precision=jax.lax.Precision.HIGHEST)

    oh_head = one_hot(head_ref[...], ent.shape[0])
    oh_tail = one_hot(tail_ref[...], ent.shape[0])
    oh_rel = one_hot(rel_ref[...], rel_tab.shape[0])

    h = gather(oh_head, ent)       # (tb, D)
    t = gather(oh_tail, ent)       # (tb, D)
    r = gather(oh_rel, rel_tab)    # (tb, D)
    cs = gather(oh_rel, cs_tab)    # (tb, D)  == cos(r) + sin(r), precomputed

    # rotated_head = h*cos(r) + h*sin(r)  ==  h * cs
    d = h * cs + r - t
    # L2 norm over the hidden (lane) axis.
    o_ref[...] = jnp.sqrt(jnp.sum(d * d, axis=-1, keepdims=True))


def rotate_score(entity_emb, relation_emb, head, relation, tail, *, tb=512):
    """Pallas-backed RotatE.forward. Returns (B,) float32 scores."""
    E, D = entity_emb.shape
    R, _ = relation_emb.shape
    B = head.shape[0]

    # Precompute cos+sin once over the (tiny) relation table — no per-batch
    # transcendentals inside the kernel.
    cs_table = (jnp.cos(relation_emb) + jnp.sin(relation_emb)).astype(jnp.float32)
    entity_emb = entity_emb.astype(jnp.float32)
    relation_emb = relation_emb.astype(jnp.float32)
    # NOTE: on v6e/v7x the tables could be stored bf16 and upcast in-kernel,
    # but with the gather fused they are read once, so f32 keeps exact parity.

    # Batch tiling with padding (no B % tb restriction).
    tb_eff = min(tb, _round_up(B, 8))
    B_pad = _round_up(B, tb_eff)
    grid = B_pad // tb_eff

    def pad_idx(idx):
        idx = idx.astype(jnp.int32)
        if B_pad != B:
            idx = jnp.pad(idx, (0, B_pad - B))  # pad rows use row 0 (valid)
        return idx.reshape(B_pad, 1)

    head_i = pad_idx(head)
    rel_i = pad_idx(relation)
    tail_i = pad_idx(tail)

    out = pl.pallas_call(
        rotate_kernel,
        out_shape=jax.ShapeDtypeStruct((B_pad, 1), jnp.float32),
        grid_spec=pltpu.PrefetchScalarGridSpec(
            num_scalar_prefetch=0,
            grid=(grid,),
            in_specs=[
                pl.BlockSpec((tb_eff, 1), lambda i: (i, 0)),  # head indices
                pl.BlockSpec((tb_eff, 1), lambda i: (i, 0)),  # relation indices
                pl.BlockSpec((tb_eff, 1), lambda i: (i, 0)),  # tail indices
                pl.BlockSpec((E, D), lambda i: (0, 0)),       # entity table (VMEM-resident)
                pl.BlockSpec((R, D), lambda i: (0, 0)),       # relation table
                pl.BlockSpec((R, D), lambda i: (0, 0)),       # cos+sin table
            ],
            out_specs=pl.BlockSpec((tb_eff, 1), lambda i: (i, 0)),
        ),
        compiler_params=pltpu.CompilerParams(
            dimension_semantics=("parallel",)
        ),
    )(head_i, rel_i, tail_i, entity_emb, relation_emb, cs_table)
    return out[:B, 0]


def xavier_uniform(key, shape, dtype=jnp.float32):
    """Deterministic xavier_uniform_ equivalent for an embedding weight."""
    fan_out, fan_in = shape  # torch: fan_in = dim, fan_out = num_embeddings
    bound = math.sqrt(6.0 / (fan_in + fan_out))
    return jax.random.uniform(key, shape, dtype, minval=-bound, maxval=bound)


def rotate_reference(entity_emb, relation_emb, head, relation, tail):
    """Pure-JAX reference matching the PyTorch forward exactly."""
    h = jnp.take(entity_emb, head, axis=0)
    t = jnp.take(entity_emb, tail, axis=0)
    r = jnp.take(relation_emb, relation, axis=0)
    rot_h = h * jnp.cos(r) + h * jnp.sin(r)
    return jnp.linalg.norm(rot_h + r - t, ord=2, axis=-1)


if __name__ == "__main__":
    entity_num, relation_num, hidden_dim = 64, 16, 128

    key = jax.random.PRNGKey(0)
    k_ent, k_rel, k_idx = jax.random.split(key, 3)

    entity_emb = xavier_uniform(k_ent, (entity_num, hidden_dim))
    relation_emb = xavier_uniform(k_rel, (relation_num, hidden_dim))

    def make_indices(k, batch):
        kh, kr, kt = jax.random.split(k, 3)
        head = jax.random.randint(kh, (batch,), 0, entity_num, dtype=jnp.int32)
        rel = jax.random.randint(kr, (batch,), 0, relation_num, dtype=jnp.int32)
        tail = jax.random.randint(kt, (batch,), 0, entity_num, dtype=jnp.int32)
        return head, rel, tail

    k_small, k_big = jax.random.split(k_idx)

    # Case 1: tiny batch (single grid step).  Case 2: non-multiple batch with a
    # multi-step grid, exercising the padding / cdiv path.
    for batch, tb, k_case in ((8, 512, k_small), (300, 128, k_big)):
        head, rel, tail = make_indices(k_case, batch)
        score = jax.block_until_ready(
            rotate_score(entity_emb, relation_emb, head, rel, tail, tb=tb))
        ref = rotate_reference(entity_emb, relation_emb, head, rel, tail)
        assert score.shape == (batch,)
        assert jnp.allclose(score, ref, atol=1e-4, rtol=1e-4), (batch, score, ref)

    print("KERNEL_OK")
</pallas_src>

<mosaic_0001>
module attributes {stable_mosaic.version = 11 : i64} {
  func.func @rotate_kernel(%arg0: i32, %arg1: memref<8x1xi32, #tpu.memory_space<vmem>>, %arg2: memref<8x1xi32, #tpu.memory_space<vmem>>, %arg3: memref<8x1xi32, #tpu.memory_space<vmem>>, %arg4: memref<64x128xf32, #tpu.memory_space<vmem>>, %arg5: memref<16x128xf32, #tpu.memory_space<vmem>>, %arg6: memref<16x128xf32, #tpu.memory_space<vmem>>, %arg7: memref<8x1xf32, #tpu.memory_space<vmem>>) attributes {dimension_semantics = [#tpu.dimension_semantics<parallel>], iteration_bounds = array<i64: 1>, scalar_prefetch = 0 : i64, scratch_operands = 0 : i64, tpu.core_type = #tpu.core_type<tc>, window_params = [{transform_indices = @transform_0, window_bounds = array<i64: 8, 1>}, {transform_indices = @transform_1, window_bounds = array<i64: 8, 1>}, {transform_indices = @transform_2, window_bounds = array<i64: 8, 1>}, {pipeline_mode = #tpu.pipeline_mode<synchronous>, transform_indices = @transform_3, window_bounds = array<i64: 64, 128>}, {pipeline_mode = #tpu.pipeline_mode<synchronous>, transform_indices = @transform_4, window_bounds = array<i64: 16, 128>}, {pipeline_mode = #tpu.pipeline_mode<synchronous>, transform_indices = @transform_5, window_bounds = array<i64: 16, 128>}, {transform_indices = @transform_6, window_bounds = array<i64: 8, 1>}]} {
    %c0 = arith.constant 0 : index
    %c0_0 = arith.constant 0 : index
    %0 = vector.load %arg4[%c0, %c0_0] : memref<64x128xf32, #tpu.memory_space<vmem>>, vector<64x128xf32>
    %c0_1 = arith.constant 0 : index
    %c0_2 = arith.constant 0 : index
    %1 = vector.load %arg5[%c0_1, %c0_2] : memref<16x128xf32, #tpu.memory_space<vmem>>, vector<16x128xf32>
    %c0_3 = arith.constant 0 : index
    %c0_4 = arith.constant 0 : index
    %2 = vector.load %arg6[%c0_3, %c0_4] : memref<16x128xf32, #tpu.memory_space<vmem>>, vector<16x128xf32>
    %c0_5 = arith.constant 0 : index
    %c0_6 = arith.constant 0 : index
    %3 = vector.load %arg1[%c0_5, %c0_6] : memref<8x1xi32, #tpu.memory_space<vmem>>, vector<8x1xi32>
    %4 = tpu.iota {dimensions = array<i32: 1>} : vector<8x64xi32>
    %5 = vector.broadcast %3 : vector<8x1xi32> to vector<8x64xi32>
    %6 = arith.cmpi eq, %5, %4 : vector<8x64xi32>
    %7 = arith.extui %6 : vector<8x64xi1> to vector<8x64xi32>
    %8 = arith.sitofp %7 : vector<8x64xi32> to vector<8x64xf32>
    %c0_7 = arith.constant 0 : index
    %c0_8 = arith.constant 0 : index
    %9 = vector.load %arg3[%c0_7, %c0_8] : memref<8x1xi32, #tpu.memory_space<vmem>>, vector<8x1xi32>
    %10 = tpu.iota {dimensions = array<i32: 1>} : vector<8x64xi32>
    %11 = vector.broadcast %9 : vector<8x1xi32> to vector<8x64xi32>
    %12 = arith.cmpi eq, %11, %10 : vector<8x64xi32>
    %13 = arith.extui %12 : vector<8x64xi1> to vector<8x64xi32>
    %14 = arith.sitofp %13 : vector<8x64xi32> to vector<8x64xf32>
    %c0_9 = arith.constant 0 : index
    %c0_10 = arith.constant 0 : index
    %15 = vector.load %arg2[%c0_9, %c0_10] : memref<8x1xi32, #tpu.memory_space<vmem>>, vector<8x1xi32>
    %16 = tpu.iota {dimensions = array<i32: 1>} : vector<8x16xi32>
    %17 = vector.broadcast %15 : vector<8x1xi32> to vector<8x16xi32>
    %18 = arith.cmpi eq, %17, %16 : vector<8x16xi32>
    %19 = arith.extui %18 : vector<8x16xi1> to vector<8x16xi32>
    %20 = arith.sitofp %19 : vector<8x16xi32> to vector<8x16xf32>
    %cst = arith.constant dense<0.000000e+00> : vector<8x128xf32>
    %21 = tpu.matmul %8, %0, %cst {dimension_numbers = #tpu.dot_dimension_numbers<[1], [0], [0], [1], [0, 0, 1, 1], [], []>, precision = #tpu.contract_precision<fp32>} : vector<8x64xf32>, vector<64x128xf32>, vector<8x128xf32> -> vector<8x128xf32>
    %cst_11 = arith.constant dense<0.000000e+00> : vector<8x128xf32>
    %22 = tpu.matmul %14, %0, %cst_11 {dimension_numbers = #tpu.dot_dimension_numbers<[1], [0], [0], [1], [0, 0, 1, 1], [], []>, precision = #tpu.contract_precision<fp32>} : vector<8x64xf32>, vector<64x128xf32>, vector<8x128xf32> -> vector<8x128xf32>
    %cst_12 = arith.constant dense<0.000000e+00> : vector<8x128xf32>
    %23 = tpu.matmul %20, %1, %cst_12 {dimension_numbers = #tpu.dot_dimension_numbers<[1], [0], [0], [1], [0, 0, 1, 1], [], []>, precision = #tpu.contract_precision<fp32>} : vector<8x16xf32>, vector<16x128xf32>, vector<8x128xf32> -> vector<8x128xf32>
    %cst_13 = arith.constant dense<0.000000e+00> : vector<8x128xf32>
    %24 = tpu.matmul %20, %2, %cst_13 {dimension_numbers = #tpu.dot_dimension_numbers<[1], [0], [0], [1], [0, 0, 1, 1], [], []>, precision = #tpu.contract_precision<fp32>} : vector<8x16xf32>, vector<16x128xf32>, vector<8x128xf32> -> vector<8x128xf32>
    %25 = arith.mulf %21, %24 : vector<8x128xf32>
    %26 = arith.addf %25, %23 : vector<8x128xf32>
    %27 = arith.subf %26, %22 : vector<8x128xf32>
    %28 = arith.mulf %27, %27 : vector<8x128xf32>
    %cst_14 = arith.constant dense<0.000000e+00> : vector<8xf32>
    %29 = vector.multi_reduction <add>, %28, %cst_14 [1] : vector<8x128xf32> to vector<8xf32>
    %30 = vector.shape_cast %29 : vector<8xf32> to vector<8x1xf32>
    %31 = math.sqrt %30 : vector<8x1xf32>
    %c0_15 = arith.constant 0 : index
    %c0_16 = arith.constant 0 : index
    %32 = vector.load %arg7[%c0_15, %c0_16] : memref<8x1xf32, #tpu.memory_space<vmem>>, vector<8x1xf32>
    tpu.vector_store %arg7[%c0_15, %c0_16], %31 {strides = array<i32>} : memref<8x1xf32, #tpu.memory_space<vmem>>, vector<8x1xf32>,
    return
  }
  func.func @transform_0(%arg0: i32) -> (i32, i32) {
    %c0_i32 = arith.constant 0 : i32
    %c0_i32_0 = arith.constant 0 : i32
    return %arg0, %c0_i32 : i32, i32
  }
  func.func @transform_1(%arg0: i32) -> (i32, i32) {
    %c0_i32 = arith.constant 0 : i32
    %c0_i32_0 = arith.constant 0 : i32
    return %arg0, %c0_i32 : i32, i32
  }
  func.func @transform_2(%arg0: i32) -> (i32, i32) {
    %c0_i32 = arith.constant 0 : i32
    %c0_i32_0 = arith.constant 0 : i32
    return %arg0, %c0_i32 : i32, i32
  }
  func.func @transform_3(%arg0: i32) -> (i32, i32) {
    %c0_i32 = arith.constant 0 : i32
    %c0_i32_0 = arith.constant 0 : i32
    %c0_i32_1 = arith.constant 0 : i32
    return %c0_i32, %c0_i32_0 : i32, i32
  }
  func.func @transform_4(%arg0: i32) -> (i32, i32) {
    %c0_i32 = arith.constant 0 : i32
    %c0_i32_0 = arith.constant 0 : i32
    %c0_i32_1 = arith.constant 0 : i32
    return %c0_i32, %c0_i32_0 : i32, i32
  }
  func.func @transform_5(%arg0: i32) -> (i32, i32) {
    %c0_i32 = arith.constant 0 : i32
    %c0_i32_0 = arith.constant 0 : i32
    %c0_i32_1 = arith.constant 0 : i32
    return %c0_i32, %c0_i32_0 : i32, i32
  }
  func.func @transform_6(%arg0: i32) -> (i32, i32) {
    %c0_i32 = arith.constant 0 : i32
    %c0_i32_0 = arith.constant 0 : i32
    return %arg0, %c0_i32 : i32, i32
  }
}

</mosaic_0001>

<llo_original>
// kernel: tpu_custom_call.1
$region0: #{tpu_custom_call.1}
  #allocation0 [shape = 'u32[]', space=smem, size = 0x4, offset = 0x4, fixed_abs, tag = 'smem constant byte address 0x4 - core index']
  #allocation1 [shape = 'u32[144,128]{1,0:T(1,128)}', space=vmem, size = 0x12000, scoped, tag = 'internal scratch']
  %s0 = inlined_call_operand.vmem [shape: s32[8,1], index: 0, kind: input, shape index: {}]
  %s1 = inlined_call_operand.vmem [shape: s32[8,1], index: 1, kind: input, shape index: {}]
  %s2 = inlined_call_operand.vmem [shape: s32[8,1], index: 2, kind: input, shape index: {}]
  %s3 = inlined_call_operand.hbm [shape: f32[64,128], index: 3, kind: input, shape index: {}]
  %s4 = inlined_call_operand.vmem [shape: f32[16,128], index: 4, kind: input, shape index: {}]
  %s5 = inlined_call_operand.vmem [shape: f32[16,128], index: 5, kind: input, shape index: {}]
  %s6 = inlined_call_operand.vmem [shape: f32[8,1], index: 6, kind: output, shape index: {}]
  %s7 = sld [smem:[#allocation0]]
  $region38: #{tpu_custom_call.1} parent=0
    _
  %s9 = ssub.s32 1, %s7
  %s10 = scalar_select 0, %s9, %s7
  $region1: #{tpu_custom_call.1} parent=0
    #allocation2 [shape = 'u8[32768]{0}', space=vmem, size = 0x8000, scoped, tag = 'input window, operand 3, single buffered']
    #allocation3 [shape = 's32[1]{0}', space=sflag, size = 0x4, scoped, tag = 'scoped memory for tpu_custom_call.1']
    %11 = vsyncpa [#allocation3], 0
    // Predicated region
    $region2: #{tpu_custom_call.1} parent=1 // pred_check
      _
    $region3: #{tpu_custom_call.1} parent=1 // pred_check_branch
      %13 = sbr.rel (0) target = $region5
    $region4: #{tpu_custom_call.1} parent=1 // pred_region
      _
    $region5: #{tpu_custom_call.1} parent=1 // pred_fallthru
      _
    // Predicated region
    $region6: #{tpu_custom_call.1} parent=1 // pred_check
      _
    $region7: #{tpu_custom_call.1} parent=1 // pred_check_branch
      %15 = sbr.rel (0) target = $region9
    $region8: #{tpu_custom_call.1} parent=1 // pred_region
      _
    $region9: #{tpu_custom_call.1} parent=1 // pred_fallthru
      _
    // Predicated region
    $region10: #{tpu_custom_call.1} parent=1 // pred_check
      _
    $region11: #{tpu_custom_call.1} parent=1 // pred_check_branch
      %17 = sbr.rel (0) target = $region13
    $region12: #{tpu_custom_call.1} parent=1 // pred_region
      _
    $region13: #{tpu_custom_call.1} parent=1 // pred_fallthru
      _
    // Predicated region
    $region14: #{tpu_custom_call.1} parent=1 // pred_check
      _
    $region15: #{tpu_custom_call.1} parent=1 // pred_check_branch
      %19 = sbr.rel (0) target = $region17
    $region16: #{tpu_custom_call.1} parent=1 // pred_region
      %s21 = ssub.s32 1024, 1024
      %22 = vsyncadd [#allocation3], %s21
      %s23 = sshll.u32 [#allocation2], 4
      %s24 = int_to_ptr.vmem [resolvable:$true] %s23
      %29 = dma.hbm_to_vmem [thread:$0]  %s3, 1024, %s24, [#allocation3], 128, 128, 8
    $region17: #{tpu_custom_call.1} parent=1 // pred_fallthru
      _
    // Predicated region
    $region18: #{tpu_custom_call.1} parent=1 // pred_check
      _
    $region19: #{tpu_custom_call.1} parent=1 // pred_check_branch
      %31 = sbr.rel (0) target = $region21
    $region20: #{tpu_custom_call.1} parent=1 // pred_region
      _
    $region21: #{tpu_custom_call.1} parent=1 // pred_fallthru
      _
    // Predicated region
    $region22: #{tpu_custom_call.1} parent=1 // pred_check
      _
    $region23: #{tpu_custom_call.1} parent=1 // pred_check_branch
      %33 = sbr.rel (0) target = $region25
    $region24: #{tpu_custom_call.1} parent=1 // pred_region
      _
    $region25: #{tpu_custom_call.1} parent=1 // pred_fallthru
      _
    // Predicated region
    $region26: #{tpu_custom_call.1} parent=1 // pred_check
      _
    $region27: #{tpu_custom_call.1} parent=1 // pred_check_branch
      %35 = sbr.rel (0) target = $region29
    $region28: #{tpu_custom_call.1} parent=1 // pred_region
      %36 = dma.done [#allocation3], 1024
    $region29: #{tpu_custom_call.1} parent=1 // pred_fallthru
      _
    %v37 = vld [vmem:[#allocation2] sm:$0xff]
    %v38 = vld [vmem:[#allocation2 + $0x8] sm:$0xff]
    %v39 = vld [vmem:[#allocation2 + $0x10] sm:$0xff]
    %v40 = vld [vmem:[#allocation2 + $0x18] sm:$0xff]
    %v41 = vld [vmem:[#allocation2 + $0x20] sm:$0xff]
    %v42 = vld [vmem:[#allocation2 + $0x28] sm:$0xff]
    %v43 = vld [vmem:[#allocation2 + $0x30] sm:$0xff]
    %v44 = vld [vmem:[#allocation2 + $0x38] sm:$0xff]
    %v45 = vld [vmem:[%s4] sm:$0xff]
    %v46 = vld [vmem:[%s4 + $0x8] sm:$0xff]
    %v47 = vld [vmem:[%s5] sm:$0xff]
    %v48 = vld [vmem:[%s5 + $0x8] sm:$0xff]
    %v49 = vld [vmem:[%s0] sm:$0xff]
    %v50 = vlaneseq
    %v51 = vand.u32 %v50, 127
    %52 = vset.pattern.permute.xlu0 0
    %53 = vperm.xlu0 %52, %v49
    %v54 = vpop.permute.xlu0 %53
    %vm55 = vcmp.eq.s32.totalorder %v54, %v51
    %v56 = vsel %vm55, 1, 0
    %v57 = vcvt.s32.f32 %v56
    %v58 = vld [vmem:[%s2] sm:$0xff]
    %59 = vset.pattern.permute.xlu0 0
    %60 = vperm.xlu0 %59, %v58
    %v61 = vpop.permute.xlu0 %60
    %vm62 = vcmp.eq.s32.totalorder %v61, %v51
    %v63 = vsel %vm62, 1, 0
    %v64 = vcvt.s32.f32 %v63
    %v65 = vld [vmem:[%s1] sm:$0xff]
    %66 = vset.pattern.permute.xlu0 0
    %67 = vperm.xlu0 %66, %v65
    %v68 = vpop.permute.xlu0 %67
    %vm69 = vcmp.eq.s32.totalorder %v68, %v51
    %v70 = vsel %vm69, 1, 0
    %v71 = vcvt.s32.f32 %v70
    %vm72 = vcmask 523264
    %v74 = vsel %vm72, %v57, 0
    %76 = vmatprep.subr.mxu0 0.0
    %v77 = vand.u32 %v37, 4294901760
    %78 = vmatpush1.msra.mxu0 %v77
    %79 = vmatprep.subr.mxu0 0.0
    %v80 = vand.u32 %v38, 4294901760
    %81 = vmatpush1.msra.mxu0 %v80
    %82 = vmatprep.subr.mxu0 0.0
    %v83 = vand.u32 %v39, 4294901760
    %84 = vmatpush1.msra.mxu0 %v83
    %85 = vmatprep.subr.mxu0 0.0
    %v86 = vand.u32 %v40, 4294901760
    %87 = vmatpush1.msra.mxu0 %v86
    %88 = vmatprep.subr.mxu0 0.0
    %v89 = vand.u32 %v41, 4294901760
    %90 = vmatpush1.msra.mxu0 %v89
    %91 = vmatprep.subr.mxu0 0.0
    %v92 = vand.u32 %v42, 4294901760
    %93 = vmatpush1.msra.mxu0 %v92
    %94 = vmatprep.subr.mxu0 0.0
    %v95 = vand.u32 %v43, 4294901760
    %96 = vmatpush1.msra.mxu0 %v95
    %97 = vmatprep.subr.mxu0 0.0
    %v98 = vand.u32 %v44, 4294901760
    %99 = vmatpush1.msra.mxu0 %v98
    %100 = vmatprep.subr.mxu0 0.0
    %101 = vmatpush1.msra.mxu0 0.0
    %102 = vmatprep.subr.mxu0 0.0
    %103 = vmatpush1.msra.mxu0 0.0
    %104 = vmatprep.subr.mxu0 0.0
    %105 = vmatpush1.msra.mxu0 0.0
    %106 = vmatprep.subr.mxu0 0.0
    %107 = vmatpush1.msra.mxu0 0.0
    %108 = vmatprep.subr.mxu0 0.0
    %109 = vmatpush1.msra.mxu0 0.0
    %110 = vmatprep.subr.mxu0 0.0
    %111 = vmatpush1.msra.mxu0 0.0
    %112 = vmatprep.subr.mxu0 0.0
    %113 = vmatpush1.msra.mxu0 0.0
    %114 = vmatprep.subr.mxu0 0.0
    %115 = vmatpush1.msra.mxu0 0.0
    %116 = vmatprep.subr.mxu0 0.0
    %117 = vmatpush1.msra.mxu0 0.0
    %118 = vmatprep.subr.mxu0 0.0
    %119 = vmatpush1.msra.mxu0 0.0
    %120 = vmatprep.subr.mxu0 0.0
    %121 = vmatpush1.msra.mxu0 0.0
    %122 = vmatprep.subr.mxu0 0.0
    %123 = vmatpush1.msra.mxu0 0.0
    %124 = vmatprep.subr.mxu0 0.0
    %125 = vmatpush1.msra.mxu0 0.0
    %126 = vmatprep.subr.mxu0 0.0
    %127 = vmatpush1.msra.mxu0 0.0
    %128 = vmatprep.subr.mxu0 0.0
    %129 = vmatpush1.msra.mxu0 0.0
    %130 = vmatprep.subr.mxu0 0.0
    %131 = vmatpush1.msra.mxu0 0.0
    %132 = vmatprep.subr.mxu0 0.0
    %133 = vmatpush1.msra.mxu0 0.0
    %134 = vmatprep.subr.mxu0 0.0
    %135 = vmatpush1.msra.mxu0 0.0
    %136 = vmatprep.subr.mxu0 0.0
    %137 = vmatpush1.msra.mxu0 0.0
    %138 = vmatprep.subr.mxu0 0.0
    %139 = vmatpush1.msra.mxu0 0.0
    %140 = vmatprep.subr.mxu0 0.0
    %141 = vmatpush1.msra.mxu0 0.0
    %142 = vmatprep.subr.mxu0 0.0
    %143 = vmatpush1.msra.mxu0 0.0
    %144 = vmatprep.subr.mxu0 0.0
    %145 = vmatpush1.msra.mxu0 0.0
    %146 = vmatprep.subr.mxu0 0.0
    %147 = vmatpush1.msra.mxu0 0.0
    %148 = vmatprep.mubr.f32.mxu0 0.0
    %v149 = vand.u32 %v74, 4294901760
    %v150 = vsub.f32 %v74, %v149
    %v151 = vand.u32 %v150, 4294901760
    %v152 = vsub.f32 %v150, %v151
    %v153 = vand.u32 %v152, 4294901760
    %154 = vmatmul.mubr.f32.gmra.mrb[0].mxu0 %v153
    %v155 = vpop.f32.mrb[0].mxu0
    %v156 = vadd.f32 0.0, %v155
    %v157 = vpop.f32.mrb[0].mxu0
    %158 = vdwg.mxu0
    %159 = vmatprep.subr.mxu0 0.0
    %v160 = vand.u32 %v37, 4294901760
    %v161 = vsub.f32 %v37, %v160
    %v162 = vand.u32 %v161, 4294901760
    %v163 = vsub.f32 %v161, %v162
    %v164 = vand.u32 %v163, 4294901760
    %165 = vmatpush1.msra.mxu0 %v164
    %166 = vmatprep.subr.mxu0 0.0
    %v167 = vand.u32 %v38, 4294901760
    %v168 = vsub.f32 %v38, %v167
    %v169 = vand.u32 %v168, 4294901760
    %v170 = vsub.f32 %v168, %v169
    %v171 = vand.u32 %v170, 4294901760
    %172 = vmatpush1.msra.mxu0 %v171
    %173 = vmatprep.subr.mxu0 0.0
    %v174 = vand.u32 %v39, 4294901760
    %v175 = vsub.f32 %v39, %v174
    %v176 = vand.u32 %v175, 4294901760
    %v177 = vsub.f32 %v175, %v176
    %v178 = vand.u32 %v177, 4294901760
    %179 = vmatpush1.msra.mxu0 %v178
    %180 = vmatprep.subr.mxu0 0.0
    %v181 = vand.u32 %v40, 4294901760
    %v182 = vsub.f32 %v40, %v181
    %v183 = vand.u32 %v182, 4294901760
    %v184 = vsub.f32 %v182, %v183
    %v185 = vand.u32 %v184, 4294901760
    %186 = vmatpush1.msra.mxu0 %v185
    %187 = vmatprep.subr.mxu0 0.0
    %v188 = vand.u32 %v41, 4294901760
    %v189 = vsub.f32 %v41, %v188
    %v190 = vand.u32 %v189, 4294901760
    %v191 = vsub.f32 %v189, %v190
    %v192 = vand.u32 %v191, 4294901760
    %193 = vmatpush1.msra.mxu0 %v192
    %194 = vmatprep.subr.mxu0 0.0
    %v195 = vand.u32 %v42, 4294901760
    %v196 = vsub.f32 %v42, %v195
    %v197 = vand.u32 %v196, 4294901760
    %v198 = vsub.f32 %v196, %v197
    %v199 = vand.u32 %v198, 4294901760
    %200 = vmatpush1.msra.mxu0 %v199
    %201 = vmatprep.subr.mxu0 0.0
    %v202 = vand.u32 %v43, 4294901760
    %v203 = vsub.f32 %v43, %v202
    %v204 = vand.u32 %v203, 4294901760
    %v205 = vsub.f32 %v203, %v204
    %v206 = vand.u32 %v205, 4294901760
    %207 = vmatpush1.msra.mxu0 %v206
    %208 = vmatprep.subr.mxu0 0.0
    %v209 = vand.u32 %v44, 4294901760
    %v210 = vsub.f32 %v44, %v209
    %v211 = vand.u32 %v210, 4294901760
    %v212 = vsub.f32 %v210, %v211
    %v213 = vand.u32 %v212, 4294901760
    %214 = vmatpush1.msra.mxu0 %v213
    %215 = vmatprep.subr.mxu0 0.0
    %216 = vmatpush1.msra.mxu0 0.0
    %217 = vmatprep.subr.mxu0 0.0
    %218 = vmatpush1.msra.mxu0 0.0
    %219 = vmatprep.subr.mxu0 0.0
    %220 = vmatpush1.msra.mxu0 0.0
    %221 = vmatprep.subr.mxu0 0.0
    %222 = vmatpush1.msra.mxu0 0.0
    %223 = vmatprep.subr.mxu0 0.0
    %224 = vmatpush1.msra.mxu0 0.0
    %225 = vmatprep.subr.mxu0 0.0
    %226 = vmatpush1.msra.mxu0 0.0
    %227 = vmatprep.subr.mxu0 0.0
    %228 = vmatpush1.msra.mxu0 0.0
    %229 = vmatprep.subr.mxu0 0.0
    %230 = vmatpush1.msra.mxu0 0.0
    %231 = vmatprep.subr.mxu0 0.0
    %232 = vmatpush1.msra.mxu0 0.0
    %233 = vmatprep.subr.mxu0 0.0
    %234 = vmatpush1.msra.mxu0 0.0
    %235 = vmatprep.subr.mxu0 0.0
    %236 = vmatpush1.msra.mxu0 0.0
    %237 = vmatprep.subr.mxu0 0.0
    %238 = vmatpush1.msra.mxu0 0.0
    %239 = vmatprep.subr.mxu0 0.0
    %240 = vmatpush1.msra.mxu0 0.0
    %241 = vmatprep.subr.mxu0 0.0
    %242 = vmatpush1.msra.mxu0 0.0
    %243 = vmatprep.subr.mxu0 0.0
    %244 = vmatpush1.msra.mxu0 0.0
    %245 = vmatprep.subr.mxu0 0.0
    %246 = vmatpush1.msra.mxu0 0.0
    %247 = vmatprep.subr.mxu0 0.0
    %248 = vmatpush1.msra.mxu0 0.0
    %249 = vmatprep.subr.mxu0 0.0
    %250 = vmatpush1.msra.mxu0 0.0
    %251 = vmatprep.subr.mxu0 0.0
    %252 = vmatpush1.msra.mxu0 0.0
    %253 = vmatprep.subr.mxu0 0.0
    %254 = vmatpush1.msra.mxu0 0.0
    %255 = vmatprep.subr.mxu0 0.0
    %256 = vmatpush1.msra.mxu0 0.0
    %257 = vmatprep.subr.mxu0 0.0
    %258 = vmatpush1.msra.mxu0 0.0
    %259 = vmatprep.subr.mxu0 0.0
    %260 = vmatpush1.msra.mxu0 0.0
    %261 = vmatprep.subr.mxu0 0.0
    %262 = vmatpush1.msra.mxu0 0.0
    %263 = vmatprep.mubr.f32.mxu0 0.0
    %v264 = vand.u32 %v74, 4294901760
    %265 = vmatmul.mubr.f32.gmra.mrb[0].mxu0 %v264
    %v266 = vpop.f32.mrb[0].mxu0
    %v267 = vadd.f32 %v156, %v266
    %v268 = vpop.f32.mrb[0].mxu0
    %269 = vdwg.mxu0
    %270 = vmatprep.subr.mxu0 0.0
    %v271 = vand.u32 %v37, 4294901760
    %v272 = vsub.f32 %v37, %v271
    %273 = vmatpush1.msra.mxu0 %v272
    %274 = vmatprep.subr.mxu0 0.0
    %v275 = vand.u32 %v38, 4294901760
    %v276 = vsub.f32 %v38, %v275
    %277 = vmatpush1.msra.mxu0 %v276
    %278 = vmatprep.subr.mxu0 0.0
    %v279 = vand.u32 %v39, 4294901760
    %v280 = vsub.f32 %v39, %v279
    %281 = vmatpush1.msra.mxu0 %v280
    %282 = vmatprep.subr.mxu0 0.0
    %v283 = vand.u32 %v40, 4294901760
    %v284 = vsub.f32 %v40, %v283
    %285 = vmatpush1.msra.mxu0 %v284
    %286 = vmatprep.subr.mxu0 0.0
    %v287 = vand.u32 %v41, 4294901760
    %v288 = vsub.f32 %v41, %v287
    %289 = vmatpush1.msra.mxu0 %v288
    %290 = vmatprep.subr.mxu0 0.0
    %v291 = vand.u32 %v42, 4294901760
    %v292 = vsub.f32 %v42, %v291
    %293 = vmatpush1.msra.mxu0 %v292
    %294 = vmatprep.subr.mxu0 0.0
    %v295 = vand.u32 %v43, 4294901760
    %v296 = vsub.f32 %v43, %v295
    %297 = vmatpush1.msra.mxu0 %v296
    %298 = vmatprep.subr.mxu0 0.0
    %v299 = vand.u32 %v44, 4294901760
    %v300 = vsub.f32 %v44, %v299
    %301 = vmatpush1.msra.mxu0 %v300
    %302 = vmatprep.subr.mxu0 0.0
    %303 = vmatpush1.msra.mxu0 0.0
    %304 = vmatprep.subr.mxu0 0.0
    %305 = vmatpush1.msra.mxu0 0.0
    %306 = vmatprep.subr.mxu0 0.0
    %307 = vmatpush1.msra.mxu0 0.0
    %308 = vmatprep.subr.mxu0 0.0
    %309 = vmatpush1.msra.mxu0 0.0
    %310 = vmatprep.subr.mxu0 0.0
    %311 = vmatpush1.msra.mxu0 0.0
    %312 = vmatprep.subr.mxu0 0.0
    %313 = vmatpush1.msra.mxu0 0.0
    %314 = vmatprep.subr.mxu0 0.0
    %315 = vmatpush1.msra.mxu0 0.0
    %316 = vmatprep.subr.mxu0 0.0
    %317 = vmatpush1.msra.mxu0 0.0
    %318 = vmatprep.subr.mxu0 0.0
    %319 = vmatpush1.msra.mxu0 0.0
    %320 = vmatprep.subr.mxu0 0.0
    %321 = vmatpush1.msra.mxu0 0.0
    %322 = vmatprep.subr.mxu0 0.0
    %323 = vmatpush1.msra.mxu0 0.0
    %324 = vmatprep.subr.mxu0 0.0
    %325 = vmatpush1.msra.mxu0 0.0
    %326 = vmatprep.subr.mxu0 0.0
    %327 = vmatpush1.msra.mxu0 0.0
    %328 = vmatprep.subr.mxu0 0.0
    %329 = vmatpush1.msra.mxu0 0.0
    %330 = vmatprep.subr.mxu0 0.0
    %331 = vmatpush1.msra.mxu0 0.0
    %332 = vmatprep.subr.mxu0 0.0
    %333 = vmatpush1.msra.mxu0 0.0
    %334 = vmatprep.subr.mxu0 0.0
    %335 = vmatpush1.msra.mxu0 0.0
    %336 = vmatprep.subr.mxu0 0.0
    %337 = vmatpush1.msra.mxu0 0.0
    %338 = vmatprep.subr.mxu0 0.0
    %339 = vmatpush1.msra.mxu0 0.0
    %340 = vmatprep.subr.mxu0 0.0
    %341 = vmatpush1.msra.mxu0 0.0
    %342 = vmatprep.subr.mxu0 0.0
    %343 = vmatpush1.msra.mxu0 0.0
    %344 = vmatprep.subr.mxu0 0.0
    %345 = vmatpush1.msra.mxu0 0.0
    %346 = vmatprep.subr.mxu0 0.0
    %347 = vmatpush1.msra.mxu0 0.0
    %348 = vmatprep.subr.mxu0 0.0
    %349 = vmatpush1.msra.mxu0 0.0
    %350 = vmatprep.mubr.f32.mxu0 0.0
    %v351 = vand.u32 %v74, 4294901760
    %v352 = vsub.f32 %v74, %v351
    %353 = vmatmul.mubr.f32.gmra.mrb[0].mxu0 %v352
    %v354 = vpop.f32.mrb[0].mxu0
    %v355 = vadd.f32 %v267, %v354
    %v356 = vpop.f32.mrb[0].mxu0
    %357 = vdwg.mxu0
    %358 = vmatprep.subr.mxu0 0.0
    %v359 = vand.u32 %v37, 4294901760
    %360 = vmatpush1.msra.mxu0 %v359
    %361 = vmatprep.subr.mxu0 0.0
    %v362 = vand.u32 %v38, 4294901760
    %363 = vmatpush1.msra.mxu0 %v362
    %364 = vmatprep.subr.mxu0 0.0
    %v365 = vand.u32 %v39, 4294901760
    %366 = vmatpush1.msra.mxu0 %v365
    %367 = vmatprep.subr.mxu0 0.0
    %v368 = vand.u32 %v40, 4294901760
    %369 = vmatpush1.msra.mxu0 %v368
    %370 = vmatprep.subr.mxu0 0.0
    %v371 = vand.u32 %v41, 4294901760
    %372 = vmatpush1.msra.mxu0 %v371
    %373 = vmatprep.subr.mxu0 0.0
    %v374 = vand.u32 %v42, 4294901760
    %375 = vmatpush1.msra.mxu0 %v374
    %376 = vmatprep.subr.mxu0 0.0
    %v377 = vand.u32 %v43, 4294901760
    %378 = vmatpush1.msra.mxu0 %v377
    %379 = vmatprep.subr.mxu0 0.0
    %v380 = vand.u32 %v44, 4294901760
    %381 = vmatpush1.msra.mxu0 %v380
    %382 = vmatprep.subr.mxu0 0.0
    %383 = vmatpush1.msra.mxu0 0.0
    %384 = vmatprep.subr.mxu0 0.0
    %385 = vmatpush1.msra.mxu0 0.0
    %386 = vmatprep.subr.mxu0 0.0
    %387 = vmatpush1.msra.mxu0 0.0
    %388 = vmatprep.subr.mxu0 0.0
    %389 = vmatpush1.msra.mxu0 0.0
    %390 = vmatprep.subr.mxu0 0.0
    %391 = vmatpush1.msra.mxu0 0.0
    %392 = vmatprep.subr.mxu0 0.0
    %393 = vmatpush1.msra.mxu0 0.0
    %394 = vmatprep.subr.mxu0 0.0
    %395 = vmatpush1.msra.mxu0 0.0
    %396 = vmatprep.subr.mxu0 0.0
    %397 = vmatpush1.msra.mxu0 0.0
    %398 = vmatprep.subr.mxu0 0.0
    %399 = vmatpush1.msra.mxu0 0.0
    %400 = vmatprep.subr.mxu0 0.0
    %401 = vmatpush1.msra.mxu0 0.0
    %402 = vmatprep.subr.mxu0 0.0
    %403 = vmatpush1.msra.mxu0 0.0
    %404 = vmatprep.subr.mxu0 0.0
    %405 = vmatpush1.msra.mxu0 0.0
    %406 = vmatprep.subr.mxu0 0.0
    %407 = vmatpush1.msra.mxu0 0.0
    %408 = vmatprep.subr.mxu0 0.0
    %409 = vmatpush1.msra.mxu0 0.0
    %410 = vmatprep.subr.mxu0 0.0
    %411 = vmatpush1.msra.mxu0 0.0
    %412 = vmatprep.subr.mxu0 0.0
    %413 = vmatpush1.msra.mxu0 0.0
    %414 = vmatprep.subr.mxu0 0.0
    %415 = vmatpush1.msra.mxu0 0.0
    %416 = vmatprep.subr.mxu0 0.0
    %417 = vmatpush1.msra.mxu0 0.0
    %418 = vmatprep.subr.mxu0 0.0
    %419 = vmatpush1.msra.mxu0 0.0
    %420 = vmatprep.subr.mxu0 0.0
    %421 = vmatpush1.msra.mxu0 0.0
    %422 = vmatprep.subr.mxu0 0.0
    %423 = vmatpush1.msra.mxu0 0.0
    %424 = vmatprep.subr.mxu0 0.0
    %425 = vmatpush1.msra.mxu0 0.0
    %426 = vmatprep.subr.mxu0 0.0
    %427 = vmatpush1.msra.mxu0 0.0
    %428 = vmatprep.subr.mxu0 0.0
    %429 = vmatpush1.msra.mxu0 0.0
    %430 = vmatprep.mubr.f32.mxu0 0.0
    %v431 = vand.u32 %v74, 4294901760
    %v432 = vsub.f32 %v74, %v431
    %v433 = vand.u32 %v432, 4294901760
    %434 = vmatmul.mubr.f32.gmra.mrb[0].mxu0 %v433
    %v435 = vpop.f32.mrb[0].mxu0
    %v436 = vadd.f32 %v355, %v435
    %v437 = vpop.f32.mrb[0].mxu0
    %438 = vdwg.mxu0
    %439 = vmatprep.subr.mxu0 0.0
    %v440 = vand.u32 %v37, 4294901760
    %v441 = vsub.f32 %v37, %v440
    %v442 = vand.u32 %v441, 4294901760
    %443 = vmatpush1.msra.mxu0 %v442
    %444 = vmatprep.subr.mxu0 0.0
    %v445 = vand.u32 %v38, 4294901760
    %v446 = vsub.f32 %v38, %v445
    %v447 = vand.u32 %v446, 4294901760
    %448 = vmatpush1.msra.mxu0 %v447
    %449 = vmatprep.subr.mxu0 0.0
    %v450 = vand.u32 %v39, 4294901760
    %v451 = vsub.f32 %v39, %v450
    %v452 = vand.u32 %v451, 4294901760
    %453 = vmatpush1.msra.mxu0 %v452
    %454 = vmatprep.subr.mxu0 0.0
    %v455 = vand.u32 %v40, 4294901760
    %v456 = vsub.f32 %v40, %v455
    %v457 = vand.u32 %v456, 4294901760
    %458 = vmatpush1.msra.mxu0 %v457
    %459 = vmatprep.subr.mxu0 0.0
    %v460 = vand.u32 %v41, 4294901760
    %v461 = vsub.f32 %v41, %v460
    %v462 = vand.u32 %v461, 4294901760
    %463 = vmatpush1.msra.mxu0 %v462
    %464 = vmatprep.subr.mxu0 0.0
    %v465 = vand.u32 %v42, 4294901760
    %v466 = vsub.f32 %v42, %v465
    %v467 = vand.u32 %v466, 4294901760
    %468 = vmatpush1.msra.mxu0 %v467
    %469 = vmatprep.subr.mxu0 0.0
    %v470 = vand.u32 %v43, 4294901760
    %v471 = vsub.f32 %v43, %v470
    %v472 = vand.u32 %v471, 4294901760
    %473 = vmatpush1.msra.mxu0 %v472
    %474 = vmatprep.subr.mxu0 0.0
    %v475 = vand.u32 %v44, 4294901760
    %v476 = vsub.f32 %v44, %v475
    %v477 = vand.u32 %v476, 4294901760
    %478 = vmatpush1.msra.mxu0 %v477
    %479 = vmatprep.subr.mxu0 0.0
    %480 = vmatpush1.msra.mxu0 0.0
    %481 = vmatprep.subr.mxu0 0.0
    %482 = vmatpush1.msra.mxu0 0.0
    %483 = vmatprep.subr.mxu0 0.0
    %484 = vmatpush1.msra.mxu0 0.0
    %485 = vmatprep.subr.mxu0 0.0
    %486 = vmatpush1.msra.mxu0 0.0
    %487 = vmatprep.subr.mxu0 0.0
    %488 = vmatpush1.msra.mxu0 0.0
    %489 = vmatprep.subr.mxu0 0.0
    %490 = vmatpush1.msra.mxu0 0.0
    %491 = vmatprep.subr.mxu0 0.0
    %492 = vmatpush1.msra.mxu0 0.0
    %493 = vmatprep.subr.mxu0 0.0
    %494 = vmatpush1.msra.mxu0 0.0
    %495 = vmatprep.subr.mxu0 0.0
    %496 = vmatpush1.msra.mxu0 0.0
    %497 = vmatprep.subr.mxu0 0.0
    %498 = vmatpush1.msra.mxu0 0.0
    %499 = vmatprep.subr.mxu0 0.0
    %500 = vmatpush1.msra.mxu0 0.0
    %501 = vmatprep.subr.mxu0 0.0
    %502 = vmatpush1.msra.mxu0 0.0
    %503 = vmatprep.subr.mxu0 0.0
    %504 = vmatpush1.msra.mxu0 0.0
    %505 = vmatprep.subr.mxu0 0.0
    %506 = vmatpush1.msra.mxu0 0.0
    %507 = vmatprep.subr.mxu0 0.0
    %508 = vmatpush1.msra.mxu0 0.0
    %509 = vmatprep.subr.mxu0 0.0
    %510 = vmatpush1.msra.mxu0 0.0
    %511 = vmatprep.subr.mxu0 0.0
    %512 = vmatpush1.msra.mxu0 0.0
    %513 = vmatprep.subr.mxu0 0.0
    %514 = vmatpush1.msra.mxu0 0.0
    %515 = vmatprep.subr.mxu0 0.0
    %516 = vmatpush1.msra.mxu0 0.0
    %517 = vmatprep.subr.mxu0 0.0
    %518 = vmatpush1.msra.mxu0 0.0
    %519 = vmatprep.subr.mxu0 0.0
    %520 = vmatpush1.msra.mxu0 0.0
    %521 = vmatprep.subr.mxu0 0.0
    %522 = vmatpush1.msra.mxu0 0.0
    %523 = vmatprep.subr.mxu0 0.0
    %524 = vmatpush1.msra.mxu0 0.0
    %525 = vmatprep.subr.mxu0 0.0
    %526 = vmatpush1.msra.mxu0 0.0
    %527 = vmatprep.mubr.f32.mxu0 0.0
    %v528 = vand.u32 %v74, 4294901760
    %529 = vmatmul.mubr.f32.gmra.mrb[0].mxu0 %v528
    %v530 = vpop.f32.mrb[0].mxu0
    %v531 = vadd.f32 %v436, %v530
    %v532 = vpop.f32.mrb[0].mxu0
    %533 = vdwg.mxu0
    %534 = vmatprep.subr.mxu0 0.0
    %v535 = vand.u32 %v37, 4294901760
    %536 = vmatpush1.msra.mxu0 %v535
    %537 = vmatprep.subr.mxu0 0.0
    %v538 = vand.u32 %v38, 4294901760
    %539 = vmatpush1.msra.mxu0 %v538
    %540 = vmatprep.subr.mxu0 0.0
    %v541 = vand.u32 %v39, 4294901760
    %542 = vmatpush1.msra.mxu0 %v541
    %543 = vmatprep.subr.mxu0 0.0
    %v544 = vand.u32 %v40, 4294901760
    %545 = vmatpush1.msra.mxu0 %v544
    %546 = vmatprep.subr.mxu0 0.0
    %v547 = vand.u32 %v41, 4294901760
    %548 = vmatpush1.msra.mxu0 %v547
    %549 = vmatprep.subr.mxu0 0.0
    %v550 = vand.u32 %v42, 4294901760
    %551 = vmatpush1.msra.mxu0 %v550
    %552 = vmatprep.subr.mxu0 0.0
    %v553 = vand.u32 %v43, 4294901760
    %554 = vmatpush1.msra.mxu0 %v553
    %555 = vmatprep.subr.mxu0 0.0
    %v556 = vand.u32 %v44, 4294901760
    %557 = vmatpush1.msra.mxu0 %v556
    %558 = vmatprep.subr.mxu0 0.0
    %559 = vmatpush1.msra.mxu0 0.0
    %560 = vmatprep.subr.mxu0 0.0
    %561 = vmatpush1.msra.mxu0 0.0
    %562 = vmatprep.subr.mxu0 0.0
    %563 = vmatpush1.msra.mxu0 0.0
    %564 = vmatprep.subr.mxu0 0.0
    %565 = vmatpush1.msra.mxu0 0.0
    %566 = vmatprep.subr.mxu0 0.0
    %567 = vmatpush1.msra.mxu0 0.0
    %568 = vmatprep.subr.mxu0 0.0
    %569 = vmatpush1.msra.mxu0 0.0
    %570 = vmatprep.subr.mxu0 0.0
    %571 = vmatpush1.msra.mxu0 0.0
    %572 = vmatprep.subr.mxu0 0.0
    %573 = vmatpush1.msra.mxu0 0.0
    %574 = vmatprep.subr.mxu0 0.0
    %575 = vmatpush1.msra.mxu0 0.0
    %576 = vmatprep.subr.mxu0 0.0
    %577 = vmatpush1.msra.mxu0 0.0
    %578 = vmatprep.subr.mxu0 0.0
    %579 = vmatpush1.msra.mxu0 0.0
    %580 = vmatprep.subr.mxu0 0.0
    %581 = vmatpush1.msra.mxu0 0.0
    %582 = vmatprep.subr.mxu0 0.0
    %583 = vmatpush1.msra.mxu0 0.0
    %584 = vmatprep.subr.mxu0 0.0
    %585 = vmatpush1.msra.mxu0 0.0
    %586 = vmatprep.subr.mxu0 0.0
    %587 = vmatpush1.msra.mxu0 0.0
    %588 = vmatprep.subr.mxu0 0.0
    %589 = vmatpush1.msra.mxu0 0.0
    %590 = vmatprep.subr.mxu0 0.0
    %591 = vmatpush1.msra.mxu0 0.0
    %592 = vmatprep.subr.mxu0 0.0
    %593 = vmatpush1.msra.mxu0 0.0
    %594 = vmatprep.subr.mxu0 0.0
    %595 = vmatpush1.msra.mxu0 0.0
    %596 = vmatprep.subr.mxu0 0.0
    %597 = vmatpush1.msra.mxu0 0.0
    %598 = vmatprep.subr.mxu0 0.0
    %599 = vmatpush1.msra.mxu0 0.0
    %600 = vmatprep.subr.mxu0 0.0
    %601 = vmatpush1.msra.mxu0 0.0
    %602 = vmatprep.subr.mxu0 0.0
    %603 = vmatpush1.msra.mxu0 0.0
    %604 = vmatprep.subr.mxu0 0.0
    %605 = vmatpush1.msra.mxu0 0.0
    %606 = vmatprep.mubr.f32.mxu0 0.0
    %v607 = vand.u32 %v74, 4294901760
    %608 = vmatmul.mubr.f32.gmra.mrb[0].mxu0 %v607
    %v609 = vpop.f32.mrb[0].mxu0
    %v610 = vadd.f32 %v531, %v609
    %v611 = vpop.f32.mrb[0].mxu0
    %612 = vdwg.mxu0
    %v614 = vsel %vm72, %v64, 0
    %616 = vmatprep.subr.mxu0 0.0
    %v617 = vand.u32 %v37, 4294901760
    %618 = vmatpush1.msra.mxu0 %v617
    %619 = vmatprep.subr.mxu0 0.0
    %v620 = vand.u32 %v38, 4294901760
    %621 = vmatpush1.msra.mxu0 %v620
    %622 = vmatprep.subr.mxu0 0.0
    %v623 = vand.u32 %v39, 4294901760
    %624 = vmatpush1.msra.mxu0 %v623
    %625 = vmatprep.subr.mxu0 0.0
    %v626 = vand.u32 %v40, 4294901760
    %627 = vmatpush1.msra.mxu0 %v626
    %628 = vmatprep.subr.mxu0 0.0
    %v629 = vand.u32 %v41, 4294901760
    %630 = vmatpush1.msra.mxu0 %v629
    %631 = vmatprep.subr.mxu0 0.0
    %v632 = vand.u32 %v42, 4294901760
    %633 = vmatpush1.msra.mxu0 %v632
    %634 = vmatprep.subr.mxu0 0.0
    %v635 = vand.u32 %v43, 4294901760
    %636 = vmatpush1.msra.mxu0 %v635
    %637 = vmatprep.subr.mxu0 0.0
    %v638 = vand.u32 %v44, 4294901760
    %639 = vmatpush1.msra.mxu0 %v638
    %640 = vmatprep.subr.mxu0 0.0
    %641 = vmatpush1.msra.mxu0 0.0
    %642 = vmatprep.subr.mxu0 0.0
    %643 = vmatpush1.msra.mxu0 0.0
    %644 = vmatprep.subr.mxu0 0.0
    %645 = vmatpush1.msra.mxu0 0.0
    %646 = vmatprep.subr.mxu0 0.0
    %647 = vmatpush1.msra.mxu0 0.0
    %648 = vmatprep.subr.mxu0 0.0
    %649 = vmatpush1.msra.mxu0 0.0
    %650 = vmatprep.subr.mxu0 0.0
    %651 = vmatpush1.msra.mxu0 0.0
    %652 = vmatprep.subr.mxu0 0.0
    %653 = vmatpush1.msra.mxu0 0.0
    %654 = vmatprep.subr.mxu0 0.0
    %655 = vmatpush1.msra.mxu0 0.0
    %656 = vmatprep.subr.mxu0 0.0
    %657 = vmatpush1.msra.mxu0 0.0
    %658 = vmatprep.subr.mxu0 0.0
    %659 = vmatpush1.msra.mxu0 0.0
    %660 = vmatprep.subr.mxu0 0.0
    %661 = vmatpush1.msra.mxu0 0.0
    %662 = vmatprep.subr.mxu0 0.0
    %663 = vmatpush1.msra.mxu0 0.0
    %664 = vmatprep.subr.mxu0 0.0
    %665 = vmatpush1.msra.mxu0 0.0
    %666 = vmatprep.subr.mxu0 0.0
    %667 = vmatpush1.msra.mxu0 0.0
    %668 = vmatprep.subr.mxu0 0.0
    %669 = vmatpush1.msra.mxu0 0.0
    %670 = vmatprep.subr.mxu0 0.0
    %671 = vmatpush1.msra.mxu0 0.0
    %672 = vmatprep.subr.mxu0 0.0
    %673 = vmatpush1.msra.mxu0 0.0
    %674 = vmatprep.subr.mxu0 0.0
    %675 = vmatpush1.msra.mxu0 0.0
    %676 = vmatprep.subr.mxu0 0.0
    %677 = vmatpush1.msra.mxu0 0.0
    %678 = vmatprep.subr.mxu0 0.0
    %679 = vmatpush1.msra.mxu0 0.0
    %680 = vmatprep.subr.mxu0 0.0
    %681 = vmatpush1.msra.mxu0 0.0
    %682 = vmatprep.subr.mxu0 0.0
    %683 = vmatpush1.msra.mxu0 0.0
    %684 = vmatprep.subr.mxu0 0.0
    %685 = vmatpush1.msra.mxu0 0.0
    %686 = vmatprep.subr.mxu0 0.0
    %687 = vmatpush1.msra.mxu0 0.0
    %688 = vmatprep.mubr.f32.mxu0 0.0
    %v689 = vand.u32 %v614, 4294901760
    %v690 = vsub.f32 %v614, %v689
    %v691 = vand.u32 %v690, 4294901760
    %v692 = vsub.f32 %v690, %v691
    %v693 = vand.u32 %v692, 4294901760
    %694 = vmatmul.mubr.f32.gmra.mrb[0].mxu0 %v693
    %v695 = vpop.f32.mrb[0].mxu0
    %v696 = vadd.f32 0.0, %v695
    %v697 = vpop.f32.mrb[0].mxu0
    %698 = vdwg.mxu0
    %699 = vmatprep.subr.mxu0 0.0
    %v700 = vand.u32 %v37, 4294901760
    %v701 = vsub.f32 %v37, %v700
    %v702 = vand.u32 %v701, 4294901760
    %v703 = vsub.f32 %v701, %v702
    %v704 = vand.u32 %v703, 4294901760
    %705 = vmatpush1.msra.mxu0 %v704
    %706 = vmatprep.subr.mxu0 0.0
    %v707 = vand.u32 %v38, 4294901760
    %v708 = vsub.f32 %v38, %v707
    %v709 = vand.u32 %v708, 4294901760
    %v710 = vsub.f32 %v708, %v709
    %v711 = vand.u32 %v710, 4294901760
    %712 = vmatpush1.msra.mxu0 %v711
    %713 = vmatprep.subr.mxu0 0.0
    %v714 = vand.u32 %v39, 4294901760
    %v715 = vsub.f32 %v39, %v714
    %v716 = vand.u32 %v715, 4294901760
    %v717 = vsub.f32 %v715, %v716
    %v718 = vand.u32 %v717, 4294901760
    %719 = vmatpush1.msra.mxu0 %v718
    %720 = vmatprep.subr.mxu0 0.0
    %v721 = vand.u32 %v40, 4294901760
    %v722 = vsub.f32 %v40, %v721
    %v723 = vand.u32 %v722, 4294901760
    %v724 = vsub.f32 %v722, %v723
    %v725 = vand.u32 %v724, 4294901760
    %726 = vmatpush1.msra.mxu0 %v725
    %727 = vmatprep.subr.mxu0 0.0
    %v728 = vand.u32 %v41, 4294901760
    %v729 = vsub.f32 %v41, %v728
    %v730 = vand.u32 %v729, 4294901760
    %v731 = vsub.f32 %v729, %v730
    %v732 = vand.u32 %v731, 4294901760
    %733 = vmatpush1.msra.mxu0 %v732
    %734 = vmatprep.subr.mxu0 0.0
    %v735 = vand.u32 %v42, 4294901760
    %v736 = vsub.f32 %v42, %v735
    %v737 = vand.u32 %v736, 4294901760
    %v738 = vsub.f32 %v736, %v737
    %v739 = vand.u32 %v738, 4294901760
    %740 = vmatpush1.msra.mxu0 %v739
    %741 = vmatprep.subr.mxu0 0.0
    %v742 = vand.u32 %v43, 4294901760
    %v743 = vsub.f32 %v43, %v742
    %v744 = vand.u32 %v743, 4294901760
    %v745 = vsub.f32 %v743, %v744
    %v746 = vand.u32 %v745, 4294901760
    %747 = vmatpush1.msra.mxu0 %v746
    %748 = vmatprep.subr.mxu0 0.0
    %v749 = vand.u32 %v44, 4294901760
    %v750 = vsub.f32 %v44, %v749
    %v751 = vand.u32 %v750, 4294901760
    %v752 = vsub.f32 %v750, %v751
    %v753 = vand.u32 %v752, 4294901760
    %754 = vmatpush1.msra.mxu0 %v753
    %755 = vmatprep.subr.mxu0 0.0
    %756 = vmatpush1.msra.mxu0 0.0
    %757 = vmatprep.subr.mxu0 0.0
    %758 = vmatpush1.msra.mxu0 0.0
    %759 = vmatprep.subr.mxu0 0.0
    %760 = vmatpush1.msra.mxu0 0.0
    %761 = vmatprep.subr.mxu0 0.0
    %762 = vmatpush1.msra.mxu0 0.0
    %763 = vmatprep.subr.mxu0 0.0
    %764 = vmatpush1.msra.mxu0 0.0
    %765 = vmatprep.subr.mxu0 0.0
    %766 = vmatpush1.msra.mxu0 0.0
    %767 = vmatprep.subr.mxu0 0.0
    %768 = vmatpush1.msra.mxu0 0.0
    %769 = vmatprep.subr.mxu0 0.0
    %770 = vmatpush1.msra.mxu0 0.0
    %771 = vmatprep.subr.mxu0 0.0
    %772 = vmatpush1.msra.mxu0 0.0
    %773 = vmatprep.subr.mxu0 0.0
    %774 = vmatpush1.msra.mxu0 0.0
    %775 = vmatprep.subr.mxu0 0.0
    %776 = vmatpush1.msra.mxu0 0.0
    %777 = vmatprep.subr.mxu0 0.0
    %778 = vmatpush1.msra.mxu0 0.0
    %779 = vmatprep.subr.mxu0 0.0
    %780 = vmatpush1.msra.mxu0 0.0
    %781 = vmatprep.subr.mxu0 0.0
    %782 = vmatpush1.msra.mxu0 0.0
    %783 = vmatprep.subr.mxu0 0.0
    %784 = vmatpush1.msra.mxu0 0.0
    %785 = vmatprep.subr.mxu0 0.0
    %786 = vmatpush1.msra.mxu0 0.0
    %787 = vmatprep.subr.mxu0 0.0
    %788 = vmatpush1.msra.mxu0 0.0
    %789 = vmatprep.subr.mxu0 0.0
    %790 = vmatpush1.msra.mxu0 0.0
    %791 = vmatprep.subr.mxu0 0.0
    %792 = vmatpush1.msra.mxu0 0.0
    %793 = vmatprep.subr.mxu0 0.0
    %794 = vmatpush1.msra.mxu0 0.0
    %795 = vmatprep.subr.mxu0 0.0
    %796 = vmatpush1.msra.mxu0 0.0
    %797 = vmatprep.subr.mxu0 0.0
    %798 = vmatpush1.msra.mxu0 0.0
    %799 = vmatprep.subr.mxu0 0.0
    %800 = vmatpush1.msra.mxu0 0.0
    %801 = vmatprep.subr.mxu0 0.0
    %802 = vmatpush1.msra.mxu0 0.0
    %803 = vmatprep.mubr.f32.mxu0 0.0
    %v804 = vand.u32 %v614, 4294901760
    %805 = vmatmul.mubr.f32.gmra.mrb[0].mxu0 %v804
    %v806 = vpop.f32.mrb[0].mxu0
    %v807 = vadd.f32 %v696, %v806
    %v808 = vpop.f32.mrb[0].mxu0
    %809 = vdwg.mxu0
    %810 = vmatprep.subr.mxu0 0.0
    %v811 = vand.u32 %v37, 4294901760
    %v812 = vsub.f32 %v37, %v811
    %813 = vmatpush1.msra.mxu0 %v812
    %814 = vmatprep.subr.mxu0 0.0
    %v815 = vand.u32 %v38, 4294901760
    %v816 = vsub.f32 %v38, %v815
    %817 = vmatpush1.msra.mxu0 %v816
    %818 = vmatprep.subr.mxu0 0.0
    %v819 = vand.u32 %v39, 4294901760
    %v820 = vsub.f32 %v39, %v819
    %821 = vmatpush1.msra.mxu0 %v820
    %822 = vmatprep.subr.mxu0 0.0
    %v823 = vand.u32 %v40, 4294901760
    %v824 = vsub.f32 %v40, %v823
    %825 = vmatpush1.msra.mxu0 %v824
    %826 = vmatprep.subr.mxu0 0.0
    %v827 = vand.u32 %v41, 4294901760
    %v828 = vsub.f32 %v41, %v827
    %829 = vmatpush1.msra.mxu0 %v828
    %830 = vmatprep.subr.mxu0 0.0
    %v831 = vand.u32 %v42, 4294901760
    %v832 = vsub.f32 %v42, %v831
    %833 = vmatpush1.msra.mxu0 %v832
    %834 = vmatprep.subr.mxu0 0.0
    %v835 = vand.u32 %v43, 4294901760
    %v836 = vsub.f32 %v43, %v835
    %837 = vmatpush1.msra.mxu0 %v836
    %838 = vmatprep.subr.mxu0 0.0
    %v839 = vand.u32 %v44, 4294901760
    %v840 = vsub.f32 %v44, %v839
    %841 = vmatpush1.msra.mxu0 %v840
    %842 = vmatprep.subr.mxu0 0.0
    %843 = vmatpush1.msra.mxu0 0.0
    %844 = vmatprep.subr.mxu0 0.0
    %845 = vmatpush1.msra.mxu0 0.0
    %846 = vmatprep.subr.mxu0 0.0
    %847 = vmatpush1.msra.mxu0 0.0
    %848 = vmatprep.subr.mxu0 0.0
    %849 = vmatpush1.msra.mxu0 0.0
    %850 = vmatprep.subr.mxu0 0.0
    %851 = vmatpush1.msra.mxu0 0.0
    %852 = vmatprep.subr.mxu0 0.0
    %853 = vmatpush1.msra.mxu0 0.0
    %854 = vmatprep.subr.mxu0 0.0
    %855 = vmatpush1.msra.mxu0 0.0
    %856 = vmatprep.subr.mxu0 0.0
    %857 = vmatpush1.msra.mxu0 0.0
    %858 = vmatprep.subr.mxu0 0.0
    %859 = vmatpush1.msra.mxu0 0.0
    %860 = vmatprep.subr.mxu0 0.0
    %861 = vmatpush1.msra.mxu0 0.0
    %862 = vmatprep.subr.mxu0 0.0
    %863 = vmatpush1.msra.mxu0 0.0
    %864 = vmatprep.subr.mxu0 0.0
    %865 = vmatpush1.msra.mxu0 0.0
    %866 = vmatprep.subr.mxu0 0.0
    %867 = vmatpush1.msra.mxu0 0.0
    %868 = vmatprep.subr.mxu0 0.0
    %869 = vmatpush1.msra.mxu0 0.0
    %870 = vmatprep.subr.mxu0 0.0
    %871 = vmatpush1.msra.mxu0 0.0
    %872 = vmatprep.subr.mxu0 0.0
    %873 = vmatpush1.msra.mxu0 0.0
    %874 = vmatprep.subr.mxu0 0.0
    %875 = vmatpush1.msra.mxu0 0.0
    %876 = vmatprep.subr.mxu0 0.0
    %877 = vmatpush1.msra.mxu0 0.0
    %878 = vmatprep.subr.mxu0 0.0
    %879 = vmatpush1.msra.mxu0 0.0
    %880 = vmatprep.subr.mxu0 0.0
    %881 = vmatpush1.msra.mxu0 0.0
    %882 = vmatprep.subr.mxu0 0.0
    %883 = vmatpush1.msra.mxu0 0.0
    %884 = vmatprep.subr.mxu0 0.0
    %885 = vmatpush1.msra.mxu0 0.0
    %886 = vmatprep.subr.mxu0 0.0
    %887 = vmatpush1.msra.mxu0 0.0
    %888 = vmatprep.subr.mxu0 0.0
    %889 = vmatpush1.msra.mxu0 0.0
    %890 = vmatprep.mubr.f32.mxu0 0.0
    %v891 = vand.u32 %v614, 4294901760
    %v892 = vsub.f32 %v614, %v891
    %893 = vmatmul.mubr.f32.gmra.mrb[0].mxu0 %v892
    %v894 = vpop.f32.mrb[0].mxu0
    %v895 = vadd.f32 %v807, %v894
    %v896 = vpop.f32.mrb[0].mxu0
    %897 = vdwg.mxu0
    %898 = vmatprep.subr.mxu0 0.0
    %v899 = vand.u32 %v37, 4294901760
    %900 = vmatpush1.msra.mxu0 %v899
    %901 = vmatprep.subr.mxu0 0.0
    %v902 = vand.u32 %v38, 4294901760
    %903 = vmatpush1.msra.mxu0 %v902
    %904 = vmatprep.subr.mxu0 0.0
    %v905 = vand.u32 %v39, 4294901760
    %906 = vmatpush1.msra.mxu0 %v905
    %907 = vmatprep.subr.mxu0 0.0
    %v908 = vand.u32 %v40, 4294901760
    %909 = vmatpush1.msra.mxu0 %v908
    %910 = vmatprep.subr.mxu0 0.0
    %v911 = vand.u32 %v41, 4294901760
    %912 = vmatpush1.msra.mxu0 %v911
    %913 = vmatprep.subr.mxu0 0.0
    %v914 = vand.u32 %v42, 4294901760
    %915 = vmatpush1.msra.mxu0 %v914
    %916 = vmatprep.subr.mxu0 0.0
    %v917 = vand.u32 %v43, 4294901760
    %918 = vmatpush1.msra.mxu0 %v917
    %919 = vmatprep.subr.mxu0 0.0
    %v920 = vand.u32 %v44, 4294901760
    %921 = vmatpush1.msra.mxu0 %v920
    %922 = vmatprep.subr.mxu0 0.0
    %923 = vmatpush1.msra.mxu0 0.0
    %924 = vmatprep.subr.mxu0 0.0
    %925 = vmatpush1.msra.mxu0 0.0
    %926 = vmatprep.subr.mxu0 0.0
    %927 = vmatpush1.msra.mxu0 0.0
    %928 = vmatprep.subr.mxu0 0.0
    %929 = vmatpush1.msra.mxu0 0.0
    %930 = vmatprep.subr.mxu0 0.0
    %931 = vmatpush1.msra.mxu0 0.0
    %932 = vmatprep.subr.mxu0 0.0
    %933 = vmatpush1.msra.mxu0 0.0
    %934 = vmatprep.subr.mxu0 0.0
    %935 = vmatpush1.msra.mxu0 0.0
    %936 = vmatprep.subr.mxu0 0.0
    %937 = vmatpush1.msra.mxu0 0.0
    %938 = vmatprep.subr.mxu0 0.0
    %939 = vmatpush1.msra.mxu0 0.0
    %940 = vmatprep.subr.mxu0 0.0
    %941 = vmatpush1.msra.mxu0 0.0
    %942 = vmatprep.subr.mxu0 0.0
    %943 = vmatpush1.msra.mxu0 0.0
    %944 = vmatprep.subr.mxu0 0.0
    %945 = vmatpush1.msra.mxu0 0.0
    %946 = vmatprep.subr.mxu0 0.0
    %947 = vmatpush1.msra.mxu0 0.0
    %948 = vmatprep.subr.mxu0 0.0
    %949 = vmatpush1.msra.mxu0 0.0
    %950 = vmatprep.subr.mxu0 0.0
    %951 = vmatpush1.msra.mxu0 0.0
    %952 = vmatprep.subr.mxu0 0.0
    %953 = vmatpush1.msra.mxu0 0.0
    %954 = vmatprep.subr.mxu0 0.0
    %955 = vmatpush1.msra.mxu0 0.0
    %956 = vmatprep.subr.mxu0 0.0
    %957 = vmatpush1.msra.mxu0 0.0
    %958 = vmatprep.subr.mxu0 0.0
    %959 = vmatpush1.msra.mxu0 0.0
    %960 = vmatprep.subr.mxu0 0.0
    %961 = vmatpush1.msra.mxu0 0.0
    %962 = vmatprep.subr.mxu0 0.0
    %963 = vmatpush1.msra.mxu0 0.0
    %964 = vmatprep.subr.mxu0 0.0
    %965 = vmatpush1.msra.mxu0 0.0
    %966 = vmatprep.subr.mxu0 0.0
    %967 = vmatpush1.msra.mxu0 0.0
    %968 = vmatprep.subr.mxu0 0.0
    %969 = vmatpush1.msra.mxu0 0.0
    %970 = vmatprep.mubr.f32.mxu0 0.0
    %v971 = vand.u32 %v614, 4294901760
    %v972 = vsub.f32 %v614, %v971
    %v973 = vand.u32 %v972, 4294901760
    %974 = vmatmul.mubr.f32.gmra.mrb[0].mxu0 %v973
    %v975 = vpop.f32.mrb[0].mxu0
    %v976 = vadd.f32 %v895, %v975
    %v977 = vpop.f32.mrb[0].mxu0
    %978 = vdwg.mxu0
    %979 = vmatprep.subr.mxu0 0.0
    %v980 = vand.u32 %v37, 4294901760
    %v981 = vsub.f32 %v37, %v980
    %v982 = vand.u32 %v981, 4294901760
    %983 = vmatpush1.msra.mxu0 %v982
    %984 = vmatprep.subr.mxu0 0.0
    %v985 = vand.u32 %v38, 4294901760
    %v986 = vsub.f32 %v38, %v985
    %v987 = vand.u32 %v986, 4294901760
    %988 = vmatpush1.msra.mxu0 %v987
    %989 = vmatprep.subr.mxu0 0.0
    %v990 = vand.u32 %v39, 4294901760
    %v991 = vsub.f32 %v39, %v990
    %v992 = vand.u32 %v991, 4294901760
    %993 = vmatpush1.msra.mxu0 %v992
    %994 = vmatprep.subr.mxu0 0.0
    %v995 = vand.u32 %v40, 4294901760
    %v996 = vsub.f32 %v40, %v995
    %v997 = vand.u32 %v996, 4294901760
    %998 = vmatpush1.msra.mxu0 %v997
    %999 = vmatprep.subr.mxu0 0.0
    %v1000 = vand.u32 %v41, 4294901760
    %v1001 = vsub.f32 %v41, %v1000
    %v1002 = vand.u32 %v1001, 4294901760
    %1003 = vmatpush1.msra.mxu0 %v1002
    %1004 = vmatprep.subr.mxu0 0.0
    %v1005 = vand.u32 %v42, 4294901760
    %v1006 = vsub.f32 %v42, %v1005
    %v1007 = vand.u32 %v1006, 4294901760
    %1008 = vmatpush1.msra.mxu0 %v1007
    %1009 = vmatprep.subr.mxu0 0.0
    %v1010 = vand.u32 %v43, 4294901760
    %v1011 = vsub.f32 %v43, %v1010
    %v1012 = vand.u32 %v1011, 4294901760
    %1013 = vmatpush1.msra.mxu0 %v1012
    %1014 = vmatprep.subr.mxu0 0.0
    %v1015 = vand.u32 %v44, 4294901760
    %v1016 = vsub.f32 %v44, %v1015
    %v1017 = vand.u32 %v1016, 4294901760
    %1018 = vmatpush1.msra.mxu0 %v1017
    %1019 = vmatprep.subr.mxu0 0.0
    %1020 = vmatpush1.msra.mxu0 0.0
    %1021 = vmatprep.subr.mxu0 0.0
    %1022 = vmatpush1.msra.mxu0 0.0
    %1023 = vmatprep.subr.mxu0 0.0
    %1024 = vmatpush1.msra.mxu0 0.0
    %1025 = vmatprep.subr.mxu0 0.0
    %1026 = vmatpush1.msra.mxu0 0.0
    %1027 = vmatprep.subr.mxu0 0.0
    %1028 = vmatpush1.msra.mxu0 0.0
    %1029 = vmatprep.subr.mxu0 0.0
    %1030 = vmatpush1.msra.mxu0 0.0
    %1031 = vmatprep.subr.mxu0 0.0
    %1032 = vmatpush1.msra.mxu0 0.0
    %1033 = vmatprep.subr.mxu0 0.0
    %1034 = vmatpush1.msra.mxu0 0.0
    %1035 = vmatprep.subr.mxu0 0.0
    %1036 = vmatpush1.msra.mxu0 0.0
    %1037 = vmatprep.subr.mxu0 0.0
    %1038 = vmatpush1.msra.mxu0 0.0
    %1039 = vmatprep.subr.mxu0 0.0
    %1040 = vmatpush1.msra.mxu0 0.0
    %1041 = vmatprep.subr.mxu0 0.0
    %1042 = vmatpush1.msra.mxu0 0.0
    %1043 = vmatprep.subr.mxu0 0.0
    %1044 = vmatpush1.msra.mxu0 0.0
    %1045 = vmatprep.subr.mxu0 0.0
    %1046 = vmatpush1.msra.mxu0 0.0
    %1047 = vmatprep.subr.mxu0 0.0
    %1048 = vmatpush1.msra.mxu0 0.0
    %1049 = vmatprep.subr.mxu0 0.0
    %1050 = vmatpush1.msra.mxu0 0.0
    %1051 = vmatprep.subr.mxu0 0.0
    %1052 = vmatpush1.msra.mxu0 0.0
    %1053 = vmatprep.subr.mxu0 0.0
    %1054 = vmatpush1.msra.mxu0 0.0
    %1055 = vmatprep.subr.mxu0 0.0
    %1056 = vmatpush1.msra.mxu0 0.0
    %1057 = vmatprep.subr.mxu0 0.0
    %1058 = vmatpush1.msra.mxu0 0.0
    %1059 = vmatprep.subr.mxu0 0.0
    %1060 = vmatpush1.msra.mxu0 0.0
    %1061 = vmatprep.subr.mxu0 0.0
    %1062 = vmatpush1.msra.mxu0 0.0
    %1063 = vmatprep.subr.mxu0 0.0
    %1064 = vmatpush1.msra.mxu0 0.0
    %1065 = vmatprep.subr.mxu0 0.0
    %1066 = vmatpush1.msra.mxu0 0.0
    %1067 = vmatprep.mubr.f32.mxu0 0.0
    %v1068 = vand.u32 %v614, 4294901760
    %1069 = vmatmul.mubr.f32.gmra.mrb[0].mxu0 %v1068
    %v1070 = vpop.f32.mrb[0].mxu0
    %v1071 = vadd.f32 %v976, %v1070
    %v1072 = vpop.f32.mrb[0].mxu0
    %1073 = vdwg.mxu0
    %1074 = vmatprep.subr.mxu0 0.0
    %v1075 = vand.u32 %v37, 4294901760
    %1076 = vmatpush1.msra.mxu0 %v1075
    %1077 = vmatprep.subr.mxu0 0.0
    %v1078 = vand.u32 %v38, 4294901760
    %1079 = vmatpush1.msra.mxu0 %v1078
    %1080 = vmatprep.subr.mxu0 0.0
    %v1081 = vand.u32 %v39, 4294901760
    %1082 = vmatpush1.msra.mxu0 %v1081
    %1083 = vmatprep.subr.mxu0 0.0
    %v1084 = vand.u32 %v40, 4294901760
    %1085 = vmatpush1.msra.mxu0 %v1084
    %1086 = vmatprep.subr.mxu0 0.0
    %v1087 = vand.u32 %v41, 4294901760
    %1088 = vmatpush1.msra.mxu0 %v1087
    %1089 = vmatprep.subr.mxu0 0.0
    %v1090 = vand.u32 %v42, 4294901760
    %1091 = vmatpush1.msra.mxu0 %v1090
    %1092 = vmatprep.subr.mxu0 0.0
    %v1093 = vand.u32 %v43, 4294901760
    %1094 = vmatpush1.msra.mxu0 %v1093
    %1095 = vmatprep.subr.mxu0 0.0
    %v1096 = vand.u32 %v44, 4294901760
    %1097 = vmatpush1.msra.mxu0 %v1096
    %1098 = vmatprep.subr.mxu0 0.0
    %1099 = vmatpush1.msra.mxu0 0.0
    %1100 = vmatprep.subr.mxu0 0.0
    %1101 = vmatpush1.msra.mxu0 0.0
    %1102 = vmatprep.subr.mxu0 0.0
    %1103 = vmatpush1.msra.mxu0 0.0
    %1104 = vmatprep.subr.mxu0 0.0
    %1105 = vmatpush1.msra.mxu0 0.0
    %1106 = vmatprep.subr.mxu0 0.0
    %1107 = vmatpush1.msra.mxu0 0.0
    %1108 = vmatprep.subr.mxu0 0.0
    %1109 = vmatpush1.msra.mxu0 0.0
    %1110 = vmatprep.subr.mxu0 0.0
    %1111 = vmatpush1.msra.mxu0 0.0
    %1112 = vmatprep.subr.mxu0 0.0
    %1113 = vmatpush1.msra.mxu0 0.0
    %1114 = vmatprep.subr.mxu0 0.0
    %1115 = vmatpush1.msra.mxu0 0.0
    %1116 = vmatprep.subr.mxu0 0.0
    %1117 = vmatpush1.msra.mxu0 0.0
    %1118 = vmatprep.subr.mxu0 0.0
    %1119 = vmatpush1.msra.mxu0 0.0
    %1120 = vmatprep.subr.mxu0 0.0
    %1121 = vmatpush1.msra.mxu0 0.0
    %1122 = vmatprep.subr.mxu0 0.0
    %1123 = vmatpush1.msra.mxu0 0.0
    %1124 = vmatprep.subr.mxu0 0.0
    %1125 = vmatpush1.msra.mxu0 0.0
    %1126 = vmatprep.subr.mxu0 0.0
    %1127 = vmatpush1.msra.mxu0 0.0
    %1128 = vmatprep.subr.mxu0 0.0
    %1129 = vmatpush1.msra.mxu0 0.0
    %1130 = vmatprep.subr.mxu0 0.0
    %1131 = vmatpush1.msra.mxu0 0.0
    %1132 = vmatprep.subr.mxu0 0.0
    %1133 = vmatpush1.msra.mxu0 0.0
    %1134 = vmatprep.subr.mxu0 0.0
    %1135 = vmatpush1.msra.mxu0 0.0
    %1136 = vmatprep.subr.mxu0 0.0
    %1137 = vmatpush1.msra.mxu0 0.0
    %1138 = vmatprep.subr.mxu0 0.0
    %1139 = vmatpush1.msra.mxu0 0.0
    %1140 = vmatprep.subr.mxu0 0.0
    %1141 = vmatpush1.msra.mxu0 0.0
    %1142 = vmatprep.subr.mxu0 0.0
    %1143 = vmatpush1.msra.mxu0 0.0
    %1144 = vmatprep.subr.mxu0 0.0
    %1145 = vmatpush1.msra.mxu0 0.0
    %1146 = vmatprep.mubr.f32.mxu0 0.0
    %v1147 = vand.u32 %v614, 4294901760
    %1148 = vmatmul.mubr.f32.gmra.mrb[0].mxu0 %v1147
    %v1149 = vpop.f32.mrb[0].mxu0
    %v1150 = vadd.f32 %v1071, %v1149
    %v1151 = vpop.f32.mrb[0].mxu0
    %1152 = vdwg.mxu0
    %vm1153 = vcmask 130048
    %v1155 = vsel %vm1153, %v71, 0
    %1157 = vmatprep.subr.mxu0 0.0
    %v1158 = vand.u32 %v45, 4294901760
    %1159 = vmatpush1.msra.mxu0 %v1158
    %1160 = vmatprep.subr.mxu0 0.0
    %v1161 = vand.u32 %v46, 4294901760
    %1162 = vmatpush1.msra.mxu0 %v1161
    %1163 = vmatprep.subr.mxu0 0.0
    %1164 = vmatpush1.msra.mxu0 0.0
    %1165 = vmatprep.subr.mxu0 0.0
    %1166 = vmatpush1.msra.mxu0 0.0
    %1167 = vmatprep.subr.mxu0 0.0
    %1168 = vmatpush1.msra.mxu0 0.0
    %1169 = vmatprep.subr.mxu0 0.0
    %1170 = vmatpush1.msra.mxu0 0.0
    %1171 = vmatprep.subr.mxu0 0.0
    %1172 = vmatpush1.msra.mxu0 0.0
    %1173 = vmatprep.subr.mxu0 0.0
    %1174 = vmatpush1.msra.mxu0 0.0
    %1175 = vmatprep.subr.mxu0 0.0
    %1176 = vmatpush1.msra.mxu0 0.0
    %1177 = vmatprep.subr.mxu0 0.0
    %1178 = vmatpush1.msra.mxu0 0.0
    %1179 = vmatprep.subr.mxu0 0.0
    %1180 = vmatpush1.msra.mxu0 0.0
    %1181 = vmatprep.subr.mxu0 0.0
    %1182 = vmatpush1.msra.mxu0 0.0
    %1183 = vmatprep.subr.mxu0 0.0
    %1184 = vmatpush1.msra.mxu0 0.0
    %1185 = vmatprep.subr.mxu0 0.0
    %1186 = vmatpush1.msra.mxu0 0.0
    %1187 = vmatprep.subr.mxu0 0.0
    %1188 = vmatpush1.msra.mxu0 0.0
    %1189 = vmatprep.subr.mxu0 0.0
    %1190 = vmatpush1.msra.mxu0 0.0
    %1191 = vmatprep.subr.mxu0 0.0
    %1192 = vmatpush1.msra.mxu0 0.0
    %1193 = vmatprep.subr.mxu0 0.0
    %1194 = vmatpush1.msra.mxu0 0.0
    %1195 = vmatprep.subr.mxu0 0.0
    %1196 = vmatpush1.msra.mxu0 0.0
    %1197 = vmatprep.subr.mxu0 0.0
    %1198 = vmatpush1.msra.mxu0 0.0
    %1199 = vmatprep.subr.mxu0 0.0
    %1200 = vmatpush1.msra.mxu0 0.0
    %1201 = vmatprep.subr.mxu0 0.0
    %1202 = vmatpush1.msra.mxu0 0.0
    %1203 = vmatprep.subr.mxu0 0.0
    %1204 = vmatpush1.msra.mxu0 0.0
    %1205 = vmatprep.subr.mxu0 0.0
    %1206 = vmatpush1.msra.mxu0 0.0
    %1207 = vmatprep.subr.mxu0 0.0
    %1208 = vmatpush1.msra.mxu0 0.0
    %1209 = vmatprep.subr.mxu0 0.0
    %1210 = vmatpush1.msra.mxu0 0.0
    %1211 = vmatprep.subr.mxu0 0.0
    %1212 = vmatpush1.msra.mxu0 0.0
    %1213 = vmatprep.subr.mxu0 0.0
    %1214 = vmatpush1.msra.mxu0 0.0
    %1215 = vmatprep.subr.mxu0 0.0
    %1216 = vmatpush1.msra.mxu0 0.0
    %1217 = vmatprep.subr.mxu0 0.0
    %1218 = vmatpush1.msra.mxu0 0.0
    %1219 = vmatprep.subr.mxu0 0.0
    %1220 = vmatpush1.msra.mxu0 0.0
    %1221 = vmatprep.subr.mxu0 0.0
    %1222 = vmatpush1.msra.mxu0 0.0
    %1223 = vmatprep.mubr.f32.mxu0 0.0
    %v1224 = vand.u32 %v1155, 4294901760
    %v1225 = vsub.f32 %v1155, %v1224
    %v1226 = vand.u32 %v1225, 4294901760
    %v1227 = vsub.f32 %v1225, %v1226
    %v1228 = vand.u32 %v1227, 4294901760
    %1229 = vmatmul.mubr.f32.gmra.mrb[0].mxu0 %v1228
    %v1230 = vpop.f32.mrb[0].mxu0
    %v1231 = vadd.f32 0.0, %v1230
    %v1232 = vpop.f32.mrb[0].mxu0
    %1233 = vdwg.mxu0
    %1234 = vmatprep.subr.mxu0 0.0
    %v1235 = vand.u32 %v45, 4294901760
    %v1236 = vsub.f32 %v45, %v1235
    %v1237 = vand.u32 %v1236, 4294901760
    %v1238 = vsub.f32 %v1236, %v1237
    %v1239 = vand.u32 %v1238, 4294901760
    %1240 = vmatpush1.msra.mxu0 %v1239
    %1241 = vmatprep.subr.mxu0 0.0
    %v1242 = vand.u32 %v46, 4294901760
    %v1243 = vsub.f32 %v46, %v1242
    %v1244 = vand.u32 %v1243, 4294901760
    %v1245 = vsub.f32 %v1243, %v1244
    %v1246 = vand.u32 %v1245, 4294901760
    %1247 = vmatpush1.msra.mxu0 %v1246
    %1248 = vmatprep.subr.mxu0 0.0
    %1249 = vmatpush1.msra.mxu0 0.0
    %1250 = vmatprep.subr.mxu0 0.0
    %1251 = vmatpush1.msra.mxu0 0.0
    %1252 = vmatprep.subr.mxu0 0.0
    %1253 = vmatpush1.msra.mxu0 0.0
    %1254 = vmatprep.subr.mxu0 0.0
    %1255 = vmatpush1.msra.mxu0 0.0
    %1256 = vmatprep.subr.mxu0 0.0
    %1257 = vmatpush1.msra.mxu0 0.0
    %1258 = vmatprep.subr.mxu0 0.0
    %1259 = vmatpush1.msra.mxu0 0.0
    %1260 = vmatprep.subr.mxu0 0.0
    %1261 = vmatpush1.msra.mxu0 0.0
    %1262 = vmatprep.subr.mxu0 0.0
    %1263 = vmatpush1.msra.mxu0 0.0
    %1264 = vmatprep.subr.mxu0 0.0
    %1265 = vmatpush1.msra.mxu0 0.0
    %1266 = vmatprep.subr.mxu0 0.0
    %1267 = vmatpush1.msra.mxu0 0.0
    %1268 = vmatprep.subr.mxu0 0.0
    %1269 = vmatpush1.msra.mxu0 0.0
    %1270 = vmatprep.subr.mxu0 0.0
    %1271 = vmatpush1.msra.mxu0 0.0
    %1272 = vmatprep.subr.mxu0 0.0
    %1273 = vmatpush1.msra.mxu0 0.0
    %1274 = vmatprep.subr.mxu0 0.0
    %1275 = vmatpush1.msra.mxu0 0.0
    %1276 = vmatprep.subr.mxu0 0.0
    %1277 = vmatpush1.msra.mxu0 0.0
    %1278 = vmatprep.subr.mxu0 0.0
    %1279 = vmatpush1.msra.mxu0 0.0
    %1280 = vmatprep.subr.mxu0 0.0
    %1281 = vmatpush1.msra.mxu0 0.0
    %1282 = vmatprep.subr.mxu0 0.0
    %1283 = vmatpush1.msra.mxu0 0.0
    %1284 = vmatprep.subr.mxu0 0.0
    %1285 = vmatpush1.msra.mxu0 0.0
    %1286 = vmatprep.subr.mxu0 0.0
    %1287 = vmatpush1.msra.mxu0 0.0
    %1288 = vmatprep.subr.mxu0 0.0
    %1289 = vmatpush1.msra.mxu0 0.0
    %1290 = vmatprep.subr.mxu0 0.0
    %1291 = vmatpush1.msra.mxu0 0.0
    %1292 = vmatprep.subr.mxu0 0.0
    %1293 = vmatpush1.msra.mxu0 0.0
    %1294 = vmatprep.subr.mxu0 0.0
    %1295 = vmatpush1.msra.mxu0 0.0
    %1296 = vmatprep.subr.mxu0 0.0
    %1297 = vmatpush1.msra.mxu0 0.0
    %1298 = vmatprep.subr.mxu0 0.0
    %1299 = vmatpush1.msra.mxu0 0.0
    %1300 = vmatprep.subr.mxu0 0.0
    %1301 = vmatpush1.msra.mxu0 0.0
    %1302 = vmatprep.subr.mxu0 0.0
    %1303 = vmatpush1.msra.mxu0 0.0
    %1304 = vmatprep.subr.mxu0 0.0
    %1305 = vmatpush1.msra.mxu0 0.0
    %1306 = vmatprep.subr.mxu0 0.0
    %1307 = vmatpush1.msra.mxu0 0.0
    %1308 = vmatprep.mubr.f32.mxu0 0.0
    %v1309 = vand.u32 %v1155, 4294901760
    %1310 = vmatmul.mubr.f32.gmra.mrb[0].mxu0 %v1309
    %v1311 = vpop.f32.mrb[0].mxu0
    %v1312 = vadd.f32 %v1231, %v1311
    %v1313 = vpop.f32.mrb[0].mxu0
    %1314 = vdwg.mxu0
    %1315 = vmatprep.subr.mxu0 0.0
    %v1316 = vand.u32 %v45, 4294901760
    %v1317 = vsub.f32 %v45, %v1316
    %1318 = vmatpush1.msra.mxu0 %v1317
    %1319 = vmatprep.subr.mxu0 0.0
    %v1320 = vand.u32 %v46, 4294901760
    %v1321 = vsub.f32 %v46, %v1320
    %1322 = vmatpush1.msra.mxu0 %v1321
    %1323 = vmatprep.subr.mxu0 0.0
    %1324 = vmatpush1.msra.mxu0 0.0
    %1325 = vmatprep.subr.mxu0 0.0
    %1326 = vmatpush1.msra.mxu0 0.0
    %1327 = vmatprep.subr.mxu0 0.0
    %1328 = vmatpush1.msra.mxu0 0.0
    %1329 = vmatprep.subr.mxu0 0.0
    %1330 = vmatpush1.msra.mxu0 0.0
    %1331 = vmatprep.subr.mxu0 0.0
    %1332 = vmatpush1.msra.mxu0 0.0
    %1333 = vmatprep.subr.mxu0 0.0
    %1334 = vmatpush1.msra.mxu0 0.0
    %1335 = vmatprep.subr.mxu0 0.0
    %1336 = vmatpush1.msra.mxu0 0.0
    %1337 = vmatprep.subr.mxu0 0.0
    %1338 = vmatpush1.msra.mxu0 0.0
    %1339 = vmatprep.subr.mxu0 0.0
    %1340 = vmatpush1.msra.mxu0 0.0
    %1341 = vmatprep.subr.mxu0 0.0
    %1342 = vmatpush1.msra.mxu0 0.0
    %1343 = vmatprep.subr.mxu0 0.0
    %1344 = vmatpush1.msra.mxu0 0.0
    %1345 = vmatprep.subr.mxu0 0.0
    %1346 = vmatpush1.msra.mxu0 0.0
    %1347 = vmatprep.subr.mxu0 0.0
    %1348 = vmatpush1.msra.mxu0 0.0
    %1349 = vmatprep.subr.mxu0 0.0
    %1350 = vmatpush1.msra.mxu0 0.0
    %1351 = vmatprep.subr.mxu0 0.0
    %1352 = vmatpush1.msra.mxu0 0.0
    %1353 = vmatprep.subr.mxu0 0.0
    %1354 = vmatpush1.msra.mxu0 0.0
    %1355 = vmatprep.subr.mxu0 0.0
    %1356 = vmatpush1.msra.mxu0 0.0
    %1357 = vmatprep.subr.mxu0 0.0
    %1358 = vmatpush1.msra.mxu0 0.0
    %1359 = vmatprep.subr.mxu0 0.0
    %1360 = vmatpush1.msra.mxu0 0.0
    %1361 = vmatprep.subr.mxu0 0.0
    %1362 = vmatpush1.msra.mxu0 0.0
    %1363 = vmatprep.subr.mxu0 0.0
    %1364 = vmatpush1.msra.mxu0 0.0
    %1365 = vmatprep.subr.mxu0 0.0
    %1366 = vmatpush1.msra.mxu0 0.0
    %1367 = vmatprep.subr.mxu0 0.0
    %1368 = vmatpush1.msra.mxu0 0.0
    %1369 = vmatprep.subr.mxu0 0.0
    %1370 = vmatpush1.msra.mxu0 0.0
    %1371 = vmatprep.subr.mxu0 0.0
    %1372 = vmatpush1.msra.mxu0 0.0
    %1373 = vmatprep.subr.mxu0 0.0
    %1374 = vmatpush1.msra.mxu0 0.0
    %1375 = vmatprep.subr.mxu0 0.0
    %1376 = vmatpush1.msra.mxu0 0.0
    %1377 = vmatprep.subr.mxu0 0.0
    %1378 = vmatpush1.msra.mxu0 0.0
    %1379 = vmatprep.subr.mxu0 0.0
    %1380 = vmatpush1.msra.mxu0 0.0
    %1381 = vmatprep.subr.mxu0 0.0
    %1382 = vmatpush1.msra.mxu0 0.0
    %1383 = vmatprep.mubr.f32.mxu0 0.0
    %v1384 = vand.u32 %v1155, 4294901760
    %v1385 = vsub.f32 %v1155, %v1384
    %1386 = vmatmul.mubr.f32.gmra.mrb[0].mxu0 %v1385
    %v1387 = vpop.f32.mrb[0].mxu0
    %v1388 = vadd.f32 %v1312, %v1387
    %v1389 = vpop.f32.mrb[0].mxu0
    %1390 = vdwg.mxu0
    %1391 = vmatprep.subr.mxu0 0.0
    %v1392 = vand.u32 %v45, 4294901760
    %1393 = vmatpush1.msra.mxu0 %v1392
    %1394 = vmatprep.subr.mxu0 0.0
    %v1395 = vand.u32 %v46, 4294901760
    %1396 = vmatpush1.msra.mxu0 %v1395
    %1397 = vmatprep.subr.mxu0 0.0
    %1398 = vmatpush1.msra.mxu0 0.0
    %1399 = vmatprep.subr.mxu0 0.0
    %1400 = vmatpush1.msra.mxu0 0.0
    %1401 = vmatprep.subr.mxu0 0.0
    %1402 = vmatpush1.msra.mxu0 0.0
    %1403 = vmatprep.subr.mxu0 0.0
    %1404 = vmatpush1.msra.mxu0 0.0
    %1405 = vmatprep.subr.mxu0 0.0
    %1406 = vmatpush1.msra.mxu0 0.0
    %1407 = vmatprep.subr.mxu0 0.0
    %1408 = vmatpush1.msra.mxu0 0.0
    %1409 = vmatprep.subr.mxu0 0.0
    %1410 = vmatpush1.msra.mxu0 0.0
    %1411 = vmatprep.subr.mxu0 0.0
    %1412 = vmatpush1.msra.mxu0 0.0
    %1413 = vmatprep.subr.mxu0 0.0
    %1414 = vmatpush1.msra.mxu0 0.0
    %1415 = vmatprep.subr.mxu0 0.0
    %1416 = vmatpush1.msra.mxu0 0.0
    %1417 = vmatprep.subr.mxu0 0.0
    %1418 = vmatpush1.msra.mxu0 0.0
    %1419 = vmatprep.subr.mxu0 0.0
    %1420 = vmatpush1.msra.mxu0 0.0
    %1421 = vmatprep.subr.mxu0 0.0
    %1422 = vmatpush1.msra.mxu0 0.0
    %1423 = vmatprep.subr.mxu0 0.0
    %1424 = vmatpush1.msra.mxu0 0.0
    %1425 = vmatprep.subr.mxu0 0.0
    %1426 = vmatpush1.msra.mxu0 0.0
    %1427 = vmatprep.subr.mxu0 0.0
    %1428 = vmatpush1.msra.mxu0 0.0
    %1429 = vmatprep.subr.mxu0 0.0
    %1430 = vmatpush1.msra.mxu0 0.0
    %1431 = vmatprep.subr.mxu0 0.0
    %1432 = vmatpush1.msra.mxu0 0.0
    %1433 = vmatprep.subr.mxu0 0.0
    %1434 = vmatpush1.msra.mxu0 0.0
    %1435 = vmatprep.subr.mxu0 0.0
    %1436 = vmatpush1.msra.mxu0 0.0
    %1437 = vmatprep.subr.mxu0 0.0
    %1438 = vmatpush1.msra.mxu0 0.0
    %1439 = vmatprep.subr.mxu0 0.0
    %1440 = vmatpush1.msra.mxu0 0.0
    %1441 = vmatprep.subr.mxu0 0.0
    %1442 = vmatpush1.msra.mxu0 0.0
    %1443 = vmatprep.subr.mxu0 0.0
    %1444 = vmatpush1.msra.mxu0 0.0
    %1445 = vmatprep.subr.mxu0 0.0
    %1446 = vmatpush1.msra.mxu0 0.0
    %1447 = vmatprep.subr.mxu0 0.0
    %1448 = vmatpush1.msra.mxu0 0.0
    %1449 = vmatprep.subr.mxu0 0.0
    %1450 = vmatpush1.msra.mxu0 0.0
    %1451 = vmatprep.subr.mxu0 0.0
    %1452 = vmatpush1.msra.mxu0 0.0
    %1453 = vmatprep.subr.mxu0 0.0
    %1454 = vmatpush1.msra.mxu0 0.0
    %1455 = vmatprep.subr.mxu0 0.0
    %1456 = vmatpush1.msra.mxu0 0.0
    %1457 = vmatprep.mubr.f32.mxu0 0.0
    %v1458 = vand.u32 %v1155, 4294901760
    %v1459 = vsub.f32 %v1155, %v1458
    %v1460 = vand.u32 %v1459, 4294901760
    %1461 = vmatmul.mubr.f32.gmra.mrb[0].mxu0 %v1460
    %v1462 = vpop.f32.mrb[0].mxu0
    %v1463 = vadd.f32 %v1388, %v1462
    %v1464 = vpop.f32.mrb[0].mxu0
    %1465 = vdwg.mxu0
    %1466 = vmatprep.subr.mxu0 0.0
    %v1467 = vand.u32 %v45, 4294901760
    %v1468 = vsub.f32 %v45, %v1467
    %v1469 = vand.u32 %v1468, 4294901760
    %1470 = vmatpush1.msra.mxu0 %v1469
    %1471 = vmatprep.subr.mxu0 0.0
    %v1472 = vand.u32 %v46, 4294901760
    %v1473 = vsub.f32 %v46, %v1472
    %v1474 = vand.u32 %v1473, 4294901760
    %1475 = vmatpush1.msra.mxu0 %v1474
    %1476 = vmatprep.subr.mxu0 0.0
    %1477 = vmatpush1.msra.mxu0 0.0
    %1478 = vmatprep.subr.mxu0 0.0
    %1479 = vmatpush1.msra.mxu0 0.0
    %1480 = vmatprep.subr.mxu0 0.0
    %1481 = vmatpush1.msra.mxu0 0.0
    %1482 = vmatprep.subr.mxu0 0.0
    %1483 = vmatpush1.msra.mxu0 0.0
    %1484 = vmatprep.subr.mxu0 0.0
    %1485 = vmatpush1.msra.mxu0 0.0
    %1486 = vmatprep.subr.mxu0 0.0
    %1487 = vmatpush1.msra.mxu0 0.0
    %1488 = vmatprep.subr.mxu0 0.0
    %1489 = vmatpush1.msra.mxu0 0.0
    %1490 = vmatprep.subr.mxu0 0.0
    %1491 = vmatpush1.msra.mxu0 0.0
    %1492 = vmatprep.subr.mxu0 0.0
    %1493 = vmatpush1.msra.mxu0 0.0
    %1494 = vmatprep.subr.mxu0 0.0
    %1495 = vmatpush1.msra.mxu0 0.0
    %1496 = vmatprep.subr.mxu0 0.0
    %1497 = vmatpush1.msra.mxu0 0.0
    %1498 = vmatprep.subr.mxu0 0.0
    %1499 = vmatpush1.msra.mxu0 0.0
    %1500 = vmatprep.subr.mxu0 0.0
    %1501 = vmatpush1.msra.mxu0 0.0
    %1502 = vmatprep.subr.mxu0 0.0
    %1503 = vmatpush1.msra.mxu0 0.0
    %1504 = vmatprep.subr.mxu0 0.0
    %1505 = vmatpush1.msra.mxu0 0.0
    %1506 = vmatprep.subr.mxu0 0.0
    %1507 = vmatpush1.msra.mxu0 0.0
    %1508 = vmatprep.subr.mxu0 0.0
    %1509 = vmatpush1.msra.mxu0 0.0
    %1510 = vmatprep.subr.mxu0 0.0
    %1511 = vmatpush1.msra.mxu0 0.0
    %1512 = vmatprep.subr.mxu0 0.0
    %1513 = vmatpush1.msra.mxu0 0.0
    %1514 = vmatprep.subr.mxu0 0.0
    %1515 = vmatpush1.msra.mxu0 0.0
    %1516 = vmatprep.subr.mxu0 0.0
    %1517 = vmatpush1.msra.mxu0 0.0
    %1518 = vmatprep.subr.mxu0 0.0
    %1519 = vmatpush1.msra.mxu0 0.0
    %1520 = vmatprep.subr.mxu0 0.0
    %1521 = vmatpush1.msra.mxu0 0.0
    %1522 = vmatprep.subr.mxu0 0.0
    %1523 = vmatpush1.msra.mxu0 0.0
    %1524 = vmatprep.subr.mxu0 0.0
    %1525 = vmatpush1.msra.mxu0 0.0
    %1526 = vmatprep.subr.mxu0 0.0
    %1527 = vmatpush1.msra.mxu0 0.0
    %1528 = vmatprep.subr.mxu0 0.0
    %1529 = vmatpush1.msra.mxu0 0.0
    %1530 = vmatprep.subr.mxu0 0.0
    %1531 = vmatpush1.msra.mxu0 0.0
    %1532 = vmatprep.subr.mxu0 0.0
    %1533 = vmatpush1.msra.mxu0 0.0
    %1534 = vmatprep.subr.mxu0 0.0
    %1535 = vmatpush1.msra.mxu0 0.0
    %1536 = vmatprep.mubr.f32.mxu0 0.0
    %v1537 = vand.u32 %v1155, 4294901760
    %1538 = vmatmul.mubr.f32.gmra.mrb[0].mxu0 %v1537
    %v1539 = vpop.f32.mrb[0].mxu0
    %v1540 = vadd.f32 %v1463, %v1539
    %v1541 = vpop.f32.mrb[0].mxu0
    %1542 = vdwg.mxu0
    %1543 = vmatprep.subr.mxu0 0.0
    %v1544 = vand.u32 %v45, 4294901760
    %1545 = vmatpush1.msra.mxu0 %v1544
    %1546 = vmatprep.subr.mxu0 0.0
    %v1547 = vand.u32 %v46, 4294901760
    %1548 = vmatpush1.msra.mxu0 %v1547
    %1549 = vmatprep.subr.mxu0 0.0
    %1550 = vmatpush1.msra.mxu0 0.0
    %1551 = vmatprep.subr.mxu0 0.0
    %1552 = vmatpush1.msra.mxu0 0.0
    %1553 = vmatprep.subr.mxu0 0.0
    %1554 = vmatpush1.msra.mxu0 0.0
    %1555 = vmatprep.subr.mxu0 0.0
    %1556 = vmatpush1.msra.mxu0 0.0
    %1557 = vmatprep.subr.mxu0 0.0
    %1558 = vmatpush1.msra.mxu0 0.0
    %1559 = vmatprep.subr.mxu0 0.0
    %1560 = vmatpush1.msra.mxu0 0.0
    %1561 = vmatprep.subr.mxu0 0.0
    %1562 = vmatpush1.msra.mxu0 0.0
    %1563 = vmatprep.subr.mxu0 0.0
    %1564 = vmatpush1.msra.mxu0 0.0
    %1565 = vmatprep.subr.mxu0 0.0
    %1566 = vmatpush1.msra.mxu0 0.0
    %1567 = vmatprep.subr.mxu0 0.0
    %1568 = vmatpush1.msra.mxu0 0.0
    %1569 = vmatprep.subr.mxu0 0.0
    %1570 = vmatpush1.msra.mxu0 0.0
    %1571 = vmatprep.subr.mxu0 0.0
    %1572 = vmatpush1.msra.mxu0 0.0
    %1573 = vmatprep.subr.mxu0 0.0
    %1574 = vmatpush1.msra.mxu0 0.0
    %1575 = vmatprep.subr.mxu0 0.0
    %1576 = vmatpush1.msra.mxu0 0.0
    %1577 = vmatprep.subr.mxu0 0.0
    %1578 = vmatpush1.msra.mxu0 0.0
    %1579 = vmatprep.subr.mxu0 0.0
    %1580 = vmatpush1.msra.mxu0 0.0
    %1581 = vmatprep.subr.mxu0 0.0
    %1582 = vmatpush1.msra.mxu0 0.0
    %1583 = vmatprep.subr.mxu0 0.0
    %1584 = vmatpush1.msra.mxu0 0.0
    %1585 = vmatprep.subr.mxu0 0.0
    %1586 = vmatpush1.msra.mxu0 0.0
    %1587 = vmatprep.subr.mxu0 0.0
    %1588 = vmatpush1.msra.mxu0 0.0
    %1589 = vmatprep.subr.mxu0 0.0
    %1590 = vmatpush1.msra.mxu0 0.0
    %1591 = vmatprep.subr.mxu0 0.0
    %1592 = vmatpush1.msra.mxu0 0.0
    %1593 = vmatprep.subr.mxu0 0.0
    %1594 = vmatpush1.msra.mxu0 0.0
    %1595 = vmatprep.subr.mxu0 0.0
    %1596 = vmatpush1.msra.mxu0 0.0
    %1597 = vmatprep.subr.mxu0 0.0
    %1598 = vmatpush1.msra.mxu0 0.0
    %1599 = vmatprep.subr.mxu0 0.0
    %1600 = vmatpush1.msra.mxu0 0.0
    %1601 = vmatprep.subr.mxu0 0.0
    %1602 = vmatpush1.msra.mxu0 0.0
    %1603 = vmatprep.subr.mxu0 0.0
    %1604 = vmatpush1.msra.mxu0 0.0
    %1605 = vmatprep.subr.mxu0 0.0
    %1606 = vmatpush1.msra.mxu0 0.0
    %1607 = vmatprep.subr.mxu0 0.0
    %1608 = vmatpush1.msra.mxu0 0.0
    %1609 = vmatprep.mubr.f32.mxu0 0.0
    %v1610 = vand.u32 %v1155, 4294901760
    %1611 = vmatmul.mubr.f32.gmra.mrb[0].mxu0 %v1610
    %v1612 = vpop.f32.mrb[0].mxu0
    %v1613 = vadd.f32 %v1540, %v1612
    %v1614 = vpop.f32.mrb[0].mxu0
    %1615 = vdwg.mxu0
    %1616 = vmatprep.subr.mxu0 0.0
    %v1617 = vand.u32 %v47, 4294901760
    %1618 = vmatpush1.msra.mxu0 %v1617
    %1619 = vmatprep.subr.mxu0 0.0
    %v1620 = vand.u32 %v48, 4294901760
    %1621 = vmatpush1.msra.mxu0 %v1620
    %1622 = vmatprep.subr.mxu0 0.0
    %1623 = vmatpush1.msra.mxu0 0.0
    %1624 = vmatprep.subr.mxu0 0.0
    %1625 = vmatpush1.msra.mxu0 0.0
    %1626 = vmatprep.subr.mxu0 0.0
    %1627 = vmatpush1.msra.mxu0 0.0
    %1628 = vmatprep.subr.mxu0 0.0
    %1629 = vmatpush1.msra.mxu0 0.0
    %1630 = vmatprep.subr.mxu0 0.0
    %1631 = vmatpush1.msra.mxu0 0.0
    %1632 = vmatprep.subr.mxu0 0.0
    %1633 = vmatpush1.msra.mxu0 0.0
    %1634 = vmatprep.subr.mxu0 0.0
    %1635 = vmatpush1.msra.mxu0 0.0
    %1636 = vmatprep.subr.mxu0 0.0
    %1637 = vmatpush1.msra.mxu0 0.0
    %1638 = vmatprep.subr.mxu0 0.0
    %1639 = vmatpush1.msra.mxu0 0.0
    %1640 = vmatprep.subr.mxu0 0.0
    %1641 = vmatpush1.msra.mxu0 0.0
    %1642 = vmatprep.subr.mxu0 0.0
    %1643 = vmatpush1.msra.mxu0 0.0
    %1644 = vmatprep.subr.mxu0 0.0
    %1645 = vmatpush1.msra.mxu0 0.0
    %1646 = vmatprep.subr.mxu0 0.0
    %1647 = vmatpush1.msra.mxu0 0.0
    %1648 = vmatprep.subr.mxu0 0.0
    %1649 = vmatpush1.msra.mxu0 0.0
    %1650 = vmatprep.subr.mxu0 0.0
    %1651 = vmatpush1.msra.mxu0 0.0
    %1652 = vmatprep.subr.mxu0 0.0
    %1653 = vmatpush1.msra.mxu0 0.0
    %1654 = vmatprep.subr.mxu0 0.0
    %1655 = vmatpush1.msra.mxu0 0.0
    %1656 = vmatprep.subr.mxu0 0.0
    %1657 = vmatpush1.msra.mxu0 0.0
    %1658 = vmatprep.subr.mxu0 0.0
    %1659 = vmatpush1.msra.mxu0 0.0
    %1660 = vmatprep.subr.mxu0 0.0
    %1661 = vmatpush1.msra.mxu0 0.0
    %1662 = vmatprep.subr.mxu0 0.0
    %1663 = vmatpush1.msra.mxu0 0.0
    %1664 = vmatprep.subr.mxu0 0.0
    %1665 = vmatpush1.msra.mxu0 0.0
    %1666 = vmatprep.subr.mxu0 0.0
    %1667 = vmatpush1.msra.mxu0 0.0
    %1668 = vmatprep.subr.mxu0 0.0
    %1669 = vmatpush1.msra.mxu0 0.0
    %1670 = vmatprep.subr.mxu0 0.0
    %1671 = vmatpush1.msra.mxu0 0.0
    %1672 = vmatprep.subr.mxu0 0.0
    %1673 = vmatpush1.msra.mxu0 0.0
    %1674 = vmatprep.subr.mxu0 0.0
    %1675 = vmatpush1.msra.mxu0 0.0
    %1676 = vmatprep.subr.mxu0 0.0
    %1677 = vmatpush1.msra.mxu0 0.0
    %1678 = vmatprep.subr.mxu0 0.0
    %1679 = vmatpush1.msra.mxu0 0.0
    %1680 = vmatprep.subr.mxu0 0.0
    %1681 = vmatpush1.msra.mxu0 0.0
    %1682 = vmatprep.mubr.f32.mxu0 0.0
    %v1683 = vand.u32 %v1155, 4294901760
    %v1684 = vsub.f32 %v1155, %v1683
    %v1685 = vand.u32 %v1684, 4294901760
    %v1686 = vsub.f32 %v1684, %v1685
    %v1687 = vand.u32 %v1686, 4294901760
    %1688 = vmatmul.mubr.f32.gmra.mrb[0].mxu0 %v1687
    %v1689 = vpop.f32.mrb[0].mxu0
    %v1690 = vadd.f32 0.0, %v1689
    %v1691 = vpop.f32.mrb[0].mxu0
    %1692 = vdwg.mxu0
    %1693 = vmatprep.subr.mxu0 0.0
    %v1694 = vand.u32 %v47, 4294901760
    %v1695 = vsub.f32 %v47, %v1694
    %v1696 = vand.u32 %v1695, 4294901760
    %v1697 = vsub.f32 %v1695, %v1696
    %v1698 = vand.u32 %v1697, 4294901760
    %1699 = vmatpush1.msra.mxu0 %v1698
    %1700 = vmatprep.subr.mxu0 0.0
    %v1701 = vand.u32 %v48, 4294901760
    %v1702 = vsub.f32 %v48, %v1701
    %v1703 = vand.u32 %v1702, 4294901760
    %v1704 = vsub.f32 %v1702, %v1703
    %v1705 = vand.u32 %v1704, 4294901760
    %1706 = vmatpush1.msra.mxu0 %v1705
    %1707 = vmatprep.subr.mxu0 0.0
    %1708 = vmatpush1.msra.mxu0 0.0
    %1709 = vmatprep.subr.mxu0 0.0
    %1710 = vmatpush1.msra.mxu0 0.0
    %1711 = vmatprep.subr.mxu0 0.0
    %1712 = vmatpush1.msra.mxu0 0.0
    %1713 = vmatprep.subr.mxu0 0.0
    %1714 = vmatpush1.msra.mxu0 0.0
    %1715 = vmatprep.subr.mxu0 0.0
    %1716 = vmatpush1.msra.mxu0 0.0
    %1717 = vmatprep.subr.mxu0 0.0
    %1718 = vmatpush1.msra.mxu0 0.0
    %1719 = vmatprep.subr.mxu0 0.0
    %1720 = vmatpush1.msra.mxu0 0.0
    %1721 = vmatprep.subr.mxu0 0.0
    %1722 = vmatpush1.msra.mxu0 0.0
    %1723 = vmatprep.subr.mxu0 0.0
    %1724 = vmatpush1.msra.mxu0 0.0
    %1725 = vmatprep.subr.mxu0 0.0
    %1726 = vmatpush1.msra.mxu0 0.0
    %1727 = vmatprep.subr.mxu0 0.0
    %1728 = vmatpush1.msra.mxu0 0.0
    %1729 = vmatprep.subr.mxu0 0.0
    %1730 = vmatpush1.msra.mxu0 0.0
    %1731 = vmatprep.subr.mxu0 0.0
    %1732 = vmatpush1.msra.mxu0 0.0
    %1733 = vmatprep.subr.mxu0 0.0
    %1734 = vmatpush1.msra.mxu0 0.0
    %1735 = vmatprep.subr.mxu0 0.0
    %1736 = vmatpush1.msra.mxu0 0.0
    %1737 = vmatprep.subr.mxu0 0.0
    %1738 = vmatpush1.msra.mxu0 0.0
    %1739 = vmatprep.subr.mxu0 0.0
    %1740 = vmatpush1.msra.mxu0 0.0
    %1741 = vmatprep.subr.mxu0 0.0
    %1742 = vmatpush1.msra.mxu0 0.0
    %1743 = vmatprep.subr.mxu0 0.0
    %1744 = vmatpush1.msra.mxu0 0.0
    %1745 = vmatprep.subr.mxu0 0.0
    %1746 = vmatpush1.msra.mxu0 0.0
    %1747 = vmatprep.subr.mxu0 0.0
    %1748 = vmatpush1.msra.mxu0 0.0
    %1749 = vmatprep.subr.mxu0 0.0
    %1750 = vmatpush1.msra.mxu0 0.0
    %1751 = vmatprep.subr.mxu0 0.0
    %1752 = vmatpush1.msra.mxu0 0.0
    %1753 = vmatprep.subr.mxu0 0.0
    %1754 = vmatpush1.msra.mxu0 0.0
    %1755 = vmatprep.subr.mxu0 0.0
    %1756 = vmatpush1.msra.mxu0 0.0
    %1757 = vmatprep.subr.mxu0 0.0
    %1758 = vmatpush1.msra.mxu0 0.0
    %1759 = vmatprep.subr.mxu0 0.0
    %1760 = vmatpush1.msra.mxu0 0.0
    %1761 = vmatprep.subr.mxu0 0.0
    %1762 = vmatpush1.msra.mxu0 0.0
    %1763 = vmatprep.subr.mxu0 0.0
    %1764 = vmatpush1.msra.mxu0 0.0
    %1765 = vmatprep.subr.mxu0 0.0
    %1766 = vmatpush1.msra.mxu0 0.0
    %1767 = vmatprep.mubr.f32.mxu0 0.0
    %v1768 = vand.u32 %v1155, 4294901760
    %1769 = vmatmul.mubr.f32.gmra.mrb[0].mxu0 %v1768
    %v1770 = vpop.f32.mrb[0].mxu0
    %v1771 = vadd.f32 %v1690, %v1770
    %v1772 = vpop.f32.mrb[0].mxu0
    %1773 = vdwg.mxu0
    %1774 = vmatprep.subr.mxu0 0.0
    %v1775 = vand.u32 %v47, 4294901760
    %v1776 = vsub.f32 %v47, %v1775
    %1777 = vmatpush1.msra.mxu0 %v1776
    %1778 = vmatprep.subr.mxu0 0.0
    %v1779 = vand.u32 %v48, 4294901760
    %v1780 = vsub.f32 %v48, %v1779
    %1781 = vmatpush1.msra.mxu0 %v1780
    %1782 = vmatprep.subr.mxu0 0.0
    %1783 = vmatpush1.msra.mxu0 0.0
    %1784 = vmatprep.subr.mxu0 0.0
    %1785 = vmatpush1.msra.mxu0 0.0
    %1786 = vmatprep.subr.mxu0 0.0
    %1787 = vmatpush1.msra.mxu0 0.0
    %1788 = vmatprep.subr.mxu0 0.0
    %1789 = vmatpush1.msra.mxu0 0.0
    %1790 = vmatprep.subr.mxu0 0.0
    %1791 = vmatpush1.msra.mxu0 0.0
    %1792 = vmatprep.subr.mxu0 0.0
    %1793 = vmatpush1.msra.mxu0 0.0
    %1794 = vmatprep.subr.mxu0 0.0
    %1795 = vmatpush1.msra.mxu0 0.0
    %1796 = vmatprep.subr.mxu0 0.0
    %1797 = vmatpush1.msra.mxu0 0.0
    %1798 = vmatprep.subr.mxu0 0.0
    %1799 = vmatpush1.msra.mxu0 0.0
    %1800 = vmatprep.subr.mxu0 0.0
    %1801 = vmatpush1.msra.mxu0 0.0
    %1802 = vmatprep.subr.mxu0 0.0
    %1803 = vmatpush1.msra.mxu0 0.0
    %1804 = vmatprep.subr.mxu0 0.0
    %1805 = vmatpush1.msra.mxu0 0.0
    %1806 = vmatprep.subr.mxu0 0.0
    %1807 = vmatpush1.msra.mxu0 0.0
    %1808 = vmatprep.subr.mxu0 0.0
    %1809 = vmatpush1.msra.mxu0 0.0
    %1810 = vmatprep.subr.mxu0 0.0
    %1811 = vmatpush1.msra.mxu0 0.0
    %1812 = vmatprep.subr.mxu0 0.0
    %1813 = vmatpush1.msra.mxu0 0.0
    %1814 = vmatprep.subr.mxu0 0.0
    %1815 = vmatpush1.msra.mxu0 0.0
    %1816 = vmatprep.subr.mxu0 0.0
    %1817 = vmatpush1.msra.mxu0 0.0
    %1818 = vmatprep.subr.mxu0 0.0
    %1819 = vmatpush1.msra.mxu0 0.0
    %1820 = vmatprep.subr.mxu0 0.0
    %1821 = vmatpush1.msra.mxu0 0.0
    %1822 = vmatprep.subr.mxu0 0.0
    %1823 = vmatpush1.msra.mxu0 0.0
    %1824 = vmatprep.subr.mxu0 0.0
    %1825 = vmatpush1.msra.mxu0 0.0
    %1826 = vmatprep.subr.mxu0 0.0
    %1827 = vmatpush1.msra.mxu0 0.0
    %1828 = vmatprep.subr.mxu0 0.0
    %1829 = vmatpush1.msra.mxu0 0.0
    %1830 = vmatprep.subr.mxu0 0.0
    %1831 = vmatpush1.msra.mxu0 0.0
    %1832 = vmatprep.subr.mxu0 0.0
    %1833 = vmatpush1.msra.mxu0 0.0
    %1834 = vmatprep.subr.mxu0 0.0
    %1835 = vmatpush1.msra.mxu0 0.0
    %1836 = vmatprep.subr.mxu0 0.0
    %1837 = vmatpush1.msra.mxu0 0.0
    %1838 = vmatprep.subr.mxu0 0.0
    %1839 = vmatpush1.msra.mxu0 0.0
    %1840 = vmatprep.subr.mxu0 0.0
    %1841 = vmatpush1.msra.mxu0 0.0
    %1842 = vmatprep.mubr.f32.mxu0 0.0
    %v1843 = vand.u32 %v1155, 4294901760
    %v1844 = vsub.f32 %v1155, %v1843
    %1845 = vmatmul.mubr.f32.gmra.mrb[0].mxu0 %v1844
    %v1846 = vpop.f32.mrb[0].mxu0
    %v1847 = vadd.f32 %v1771, %v1846
    %v1848 = vpop.f32.mrb[0].mxu0
    %1849 = vdwg.mxu0
    %1850 = vmatprep.subr.mxu0 0.0
    %v1851 = vand.u32 %v47, 4294901760
    %1852 = vmatpush1.msra.mxu0 %v1851
    %1853 = vmatprep.subr.mxu0 0.0
    %v1854 = vand.u32 %v48, 4294901760
    %1855 = vmatpush1.msra.mxu0 %v1854
    %1856 = vmatprep.subr.mxu0 0.0
    %1857 = vmatpush1.msra.mxu0 0.0
    %1858 = vmatprep.subr.mxu0 0.0
    %1859 = vmatpush1.msra.mxu0 0.0
    %1860 = vmatprep.subr.mxu0 0.0
    %1861 = vmatpush1.msra.mxu0 0.0
    %1862 = vmatprep.subr.mxu0 0.0
    %1863 = vmatpush1.msra.mxu0 0.0
    %1864 = vmatprep.subr.mxu0 0.0
    %1865 = vmatpush1.msra.mxu0 0.0
    %1866 = vmatprep.subr.mxu0 0.0
    %1867 = vmatpush1.msra.mxu0 0.0
    %1868 = vmatprep.subr.mxu0 0.0
    %1869 = vmatpush1.msra.mxu0 0.0
    %1870 = vmatprep.subr.mxu0 0.0
    %1871 = vmatpush1.msra.mxu0 0.0
    %1872 = vmatprep.subr.mxu0 0.0
    %1873 = vmatpush1.msra.mxu0 0.0
    %1874 = vmatprep.subr.mxu0 0.0
    %1875 = vmatpush1.msra.mxu0 0.0
    %1876 = vmatprep.subr.mxu0 0.0
    %1877 = vmatpush1.msra.mxu0 0.0
    %1878 = vmatprep.subr.mxu0 0.0
    %1879 = vmatpush1.msra.mxu0 0.0
    %1880 = vmatprep.subr.mxu0 0.0
    %1881 = vmatpush1.msra.mxu0 0.0
    %1882 = vmatprep.subr.mxu0 0.0
    %1883 = vmatpush1.msra.mxu0 0.0
    %1884 = vmatprep.subr.mxu0 0.0
    %1885 = vmatpush1.msra.mxu0 0.0
    %1886 = vmatprep.subr.mxu0 0.0
    %1887 = vmatpush1.msra.mxu0 0.0
    %1888 = vmatprep.subr.mxu0 0.0
    %1889 = vmatpush1.msra.mxu0 0.0
    %1890 = vmatprep.subr.mxu0 0.0
    %1891 = vmatpush1.msra.mxu0 0.0
    %1892 = vmatprep.subr.mxu0 0.0
    %1893 = vmatpush1.msra.mxu0 0.0
    %1894 = vmatprep.subr.mxu0 0.0
    %1895 = vmatpush1.msra.mxu0 0.0
    %1896 = vmatprep.subr.mxu0 0.0
    %1897 = vmatpush1.msra.mxu0 0.0
    %1898 = vmatprep.subr.mxu0 0.0
    %1899 = vmatpush1.msra.mxu0 0.0
    %1900 = vmatprep.subr.mxu0 0.0
    %1901 = vmatpush1.msra.mxu0 0.0
    %1902 = vmatprep.subr.mxu0 0.0
    %1903 = vmatpush1.msra.mxu0 0.0
    %1904 = vmatprep.subr.mxu0 0.0
    %1905 = vmatpush1.msra.mxu0 0.0
    %1906 = vmatprep.subr.mxu0 0.0
    %1907 = vmatpush1.msra.mxu0 0.0
    %1908 = vmatprep.subr.mxu0 0.0
    %1909 = vmatpush1.msra.mxu0 0.0
    %1910 = vmatprep.subr.mxu0 0.0
    %1911 = vmatpush1.msra.mxu0 0.0
    %1912 = vmatprep.subr.mxu0 0.0
    %1913 = vmatpush1.msra.mxu0 0.0
    %1914 = vmatprep.subr.mxu0 0.0
    %1915 = vmatpush1.msra.mxu0 0.0
    %1916 = vmatprep.mubr.f32.mxu0 0.0
    %v1917 = vand.u32 %v1155, 4294901760
    %v1918 = vsub.f32 %v1155, %v1917
    %v1919 = vand.u32 %v1918, 4294901760
    %1920 = vmatmul.mubr.f32.gmra.mrb[0].mxu0 %v1919
    %v1921 = vpop.f32.mrb[0].mxu0
    %v1922 = vadd.f32 %v1847, %v1921
    %v1923 = vpop.f32.mrb[0].mxu0
    %1924 = vdwg.mxu0
    %1925 = vmatprep.subr.mxu0 0.0
    %v1926 = vand.u32 %v47, 4294901760
    %v1927 = vsub.f32 %v47, %v1926
    %v1928 = vand.u32 %v1927, 4294901760
    %1929 = vmatpush1.msra.mxu0 %v1928
    %1930 = vmatprep.subr.mxu0 0.0
    %v1931 = vand.u32 %v48, 4294901760
    %v1932 = vsub.f32 %v48, %v1931
    %v1933 = vand.u32 %v1932, 4294901760
    %1934 = vmatpush1.msra.mxu0 %v1933
    %1935 = vmatprep.subr.mxu0 0.0
    %1936 = vmatpush1.msra.mxu0 0.0
    %1937 = vmatprep.subr.mxu0 0.0
    %1938 = vmatpush1.msra.mxu0 0.0
    %1939 = vmatprep.subr.mxu0 0.0
    %1940 = vmatpush1.msra.mxu0 0.0
    %1941 = vmatprep.subr.mxu0 0.0
    %1942 = vmatpush1.msra.mxu0 0.0
    %1943 = vmatprep.subr.mxu0 0.0
    %1944 = vmatpush1.msra.mxu0 0.0
    %1945 = vmatprep.subr.mxu0 0.0
    %1946 = vmatpush1.msra.mxu0 0.0
    %1947 = vmatprep.subr.mxu0 0.0
    %1948 = vmatpush1.msra.mxu0 0.0
    %1949 = vmatprep.subr.mxu0 0.0
    %1950 = vmatpush1.msra.mxu0 0.0
    %1951 = vmatprep.subr.mxu0 0.0
    %1952 = vmatpush1.msra.mxu0 0.0
    %1953 = vmatprep.subr.mxu0 0.0
    %1954 = vmatpush1.msra.mxu0 0.0
    %1955 = vmatprep.subr.mxu0 0.0
    %1956 = vmatpush1.msra.mxu0 0.0
    %1957 = vmatprep.subr.mxu0 0.0
    %1958 = vmatpush1.msra.mxu0 0.0
    %1959 = vmatprep.subr.mxu0 0.0
    %1960 = vmatpush1.msra.mxu0 0.0
    %1961 = vmatprep.subr.mxu0 0.0
    %1962 = vmatpush1.msra.mxu0 0.0
    %1963 = vmatprep.subr.mxu0 0.0
    %1964 = vmatpush1.msra.mxu0 0.0
    %1965 = vmatprep.subr.mxu0 0.0
    %1966 = vmatpush1.msra.mxu0 0.0
    %1967 = vmatprep.subr.mxu0 0.0
    %1968 = vmatpush1.msra.mxu0 0.0
    %1969 = vmatprep.subr.mxu0 0.0
    %1970 = vmatpush1.msra.mxu0 0.0
    %1971 = vmatprep.subr.mxu0 0.0
    %1972 = vmatpush1.msra.mxu0 0.0
    %1973 = vmatprep.subr.mxu0 0.0
    %1974 = vmatpush1.msra.mxu0 0.0
    %1975 = vmatprep.subr.mxu0 0.0
    %1976 = vmatpush1.msra.mxu0 0.0
    %1977 = vmatprep.subr.mxu0 0.0
    %1978 = vmatpush1.msra.mxu0 0.0
    %1979 = vmatprep.subr.mxu0 0.0
    %1980 = vmatpush1.msra.mxu0 0.0
    %1981 = vmatprep.subr.mxu0 0.0
    %1982 = vmatpush1.msra.mxu0 0.0
    %1983 = vmatprep.subr.mxu0 0.0
    %1984 = vmatpush1.msra.mxu0 0.0
    %1985 = vmatprep.subr.mxu0 0.0
    %1986 = vmatpush1.msra.mxu0 0.0
    %1987 = vmatprep.subr.mxu0 0.0
    %1988 = vmatpush1.msra.mxu0 0.0
    %1989 = vmatprep.subr.mxu0 0.0
    %1990 = vmatpush1.msra.mxu0 0.0
    %1991 = vmatprep.subr.mxu0 0.0
    %1992 = vmatpush1.msra.mxu0 0.0
    %1993 = vmatprep.subr.mxu0 0.0
    %1994 = vmatpush1.msra.mxu0 0.0
    %1995 = vmatprep.mubr.f32.mxu0 0.0
    %v1996 = vand.u32 %v1155, 4294901760
    %1997 = vmatmul.mubr.f32.gmra.mrb[0].mxu0 %v1996
    %v1998 = vpop.f32.mrb[0].mxu0
    %v1999 = vadd.f32 %v1922, %v1998
    %v2000 = vpop.f32.mrb[0].mxu0
    %2001 = vdwg.mxu0
    %2002 = vmatprep.subr.mxu0 0.0
    %v2003 = vand.u32 %v47, 4294901760
    %2004 = vmatpush1.msra.mxu0 %v2003
    %2005 = vmatprep.subr.mxu0 0.0
    %v2006 = vand.u32 %v48, 4294901760
    %2007 = vmatpush1.msra.mxu0 %v2006
    %2008 = vmatprep.subr.mxu0 0.0
    %2009 = vmatpush1.msra.mxu0 0.0
    %2010 = vmatprep.subr.mxu0 0.0
    %2011 = vmatpush1.msra.mxu0 0.0
    %2012 = vmatprep.subr.mxu0 0.0
    %2013 = vmatpush1.msra.mxu0 0.0
    %2014 = vmatprep.subr.mxu0 0.0
    %2015 = vmatpush1.msra.mxu0 0.0
    %2016 = vmatprep.subr.mxu0 0.0
    %2017 = vmatpush1.msra.mxu0 0.0
    %2018 = vmatprep.subr.mxu0 0.0
    %2019 = vmatpush1.msra.mxu0 0.0
    %2020 = vmatprep.subr.mxu0 0.0
    %2021 = vmatpush1.msra.mxu0 0.0
    %2022 = vmatprep.subr.mxu0 0.0
    %2023 = vmatpush1.msra.mxu0 0.0
    %2024 = vmatprep.subr.mxu0 0.0
    %2025 = vmatpush1.msra.mxu0 0.0
    %2026 = vmatprep.subr.mxu0 0.0
    %2027 = vmatpush1.msra.mxu0 0.0
    %2028 = vmatprep.subr.mxu0 0.0
    %2029 = vmatpush1.msra.mxu0 0.0
    %2030 = vmatprep.subr.mxu0 0.0
    %2031 = vmatpush1.msra.mxu0 0.0
    %2032 = vmatprep.subr.mxu0 0.0
    %2033 = vmatpush1.msra.mxu0 0.0
    %2034 = vmatprep.subr.mxu0 0.0
    %2035 = vmatpush1.msra.mxu0 0.0
    %2036 = vmatprep.subr.mxu0 0.0
    %2037 = vmatpush1.msra.mxu0 0.0
    %2038 = vmatprep.subr.mxu0 0.0
    %2039 = vmatpush1.msra.mxu0 0.0
    %2040 = vmatprep.subr.mxu0 0.0
    %2041 = vmatpush1.msra.mxu0 0.0
    %2042 = vmatprep.subr.mxu0 0.0
    %2043 = vmatpush1.msra.mxu0 0.0
    %2044 = vmatprep.subr.mxu0 0.0
    %2045 = vmatpush1.msra.mxu0 0.0
    %2046 = vmatprep.subr.mxu0 0.0
    %2047 = vmatpush1.msra.mxu0 0.0
    %2048 = vmatprep.subr.mxu0 0.0
    %2049 = vmatpush1.msra.mxu0 0.0
    %2050 = vmatprep.subr.mxu0 0.0
    %2051 = vmatpush1.msra.mxu0 0.0
    %2052 = vmatprep.subr.mxu0 0.0
    %2053 = vmatpush1.msra.mxu0 0.0
    %2054 = vmatprep.subr.mxu0 0.0
    %2055 = vmatpush1.msra.mxu0 0.0
    %2056 = vmatprep.subr.mxu0 0.0
    %2057 = vmatpush1.msra.mxu0 0.0
    %2058 = vmatprep.subr.mxu0 0.0
    %2059 = vmatpush1.msra.mxu0 0.0
    %2060 = vmatprep.subr.mxu0 0.0
    %2061 = vmatpush1.msra.mxu0 0.0
    %2062 = vmatprep.subr.mxu0 0.0
    %2063 = vmatpush1.msra.mxu0 0.0
    %2064 = vmatprep.subr.mxu0 0.0
    %2065 = vmatpush1.msra.mxu0 0.0
    %2066 = vmatprep.subr.mxu0 0.0
    %2067 = vmatpush1.msra.mxu0 0.0
    %2068 = vmatprep.mubr.f32.mxu0 0.0
    %v2069 = vand.u32 %v1155, 4294901760
    %2070 = vmatmul.mubr.f32.gmra.mrb[0].mxu0 %v2069
    %v2071 = vpop.f32.mrb[0].mxu0
    %v2072 = vadd.f32 %v1999, %v2071
    %v2073 = vpop.f32.mrb[0].mxu0
    %2074 = vdwg.mxu0
    %v2075 = vmul.f32 %v610, %v2072
    %v2076 = vadd.f32 %v2075, %v1613
    %v2077 = vsub.f32 %v2076, %v1150
    %v2078 = vmul.f32 %v2077, %v2077
    %2079 = vadd.xlane.f32.xlu0 %v2078
    %v2080 = vpop.xlane.xlu0 %2079
    %v2081 = vrsqrt.pop %v2080
    %v2082 = vmul.f32 %v2080, %v2081
    %vm2083 = vcmp.eq.f32.partialorder %v2080, inf
    %v2084 = vsel %vm2083, %v2080, %v2082
    %vm2085 = vcmp.eq.f32.partialorder %v2080, 0.0
    %v2086 = vand.u32 %v2080, 2147483648
    %v2087 = vsel %vm2085, %v2086, %v2084
    %vm2088 = vcmask 7168
    %2089 = vst.msk [vmem:[%s6] sm:$0xff] %vm2088, %v2087
    // Predicated region
    $region30: #{tpu_custom_call.1} parent=1 // pred_check
      _
    $region31: #{tpu_custom_call.1} parent=1 // pred_check_branch
      %2091 = sbr.rel (0) target = $region33
    $region32: #{tpu_custom_call.1} parent=1 // pred_region
      _
    $region33: #{tpu_custom_call.1} parent=1 // pred_fallthru
      _
    // Predicated region
    $region34: #{tpu_custom_call.1} parent=1 // pred_check
      _
    $region35: #{tpu_custom_call.1} parent=1 // pred_check_branch
      %2093 = sbr.rel (0) target = $region37
    $region36: #{tpu_custom_call.1} parent=1 // pred_region
      _
    $region37: #{tpu_custom_call.1} parent=1 // pred_fallthru
      _
    %2094 = vsyncpa [#allocation3], 1

</llo_original>
